<compile_context>
chip_gen: v6e
topology: v6e:2x2x1
jax: 0.10.0
libtpu: 0.0.40
codegen_flags: <defaults>
</compile_context>

<pallas_src>
import numpy as np
import jax
import jax.numpy as jnp
from jax.experimental import pallas as pl
from jax.experimental.pallas import tpu as pltpu

EPS = 1e-5


# ----------------------------------------------------------------------------
# host-side constants: Kaiser low-pass filter taps
# ----------------------------------------------------------------------------
def _kaiser_lpf_kernel(scale: int, kernel_size: int = 17) -> np.ndarray:
    # numpy re-implementation of scipy.signal.kaiser_atten / kaiser_beta /
    # windows.kaiser used by make_lpf (kernel normalized to sum to 1).
    atten = 2.285 * (kernel_size - 1) * np.pi * (scale ** -1) + 7.95
    if atten > 50:
        beta = 0.1102 * (atten - 8.7)
    elif atten > 21:
        beta = 0.5842 * (atten - 21) ** 0.4 + 0.07886 * (atten - 21)
    else:
        beta = 0.0
    win = np.kaiser(kernel_size, beta)
    X = np.arange(kernel_size) - kernel_size // 2
    K = np.sinc(X / scale) * win
    return (K / K.sum()).astype(np.float32)


def _combined_lpf_coeffs(lpf_taps: np.ndarray, scale: int, length: int):
    """Fold `repeat(x, s) -> conv1d(17 taps, zero pad)` into stride-s shifted MACs.

    Because the upsampled signal is s-replicated, all taps that hit the same
    pooled sample can be pre-summed.  Returns (d_offsets, coef) such that
        up[:, l] = sum_d coef[d_idx, l] * midx[:, l + s*d]
    where midx is the s-replicated (FiLM-ed) pooled signal.  The reference
    conv's zero padding is baked into coef (coef == 0 wherever l + s*d is
    outside [0, L)), so plain lane ROTATES reproduce the zero-padded conv
    exactly: wrapped lanes get weight 0.
    """
    ks = len(lpf_taps)
    half = ks // 2
    s = scale
    d_lo = -((half + s - 1) // s)          # floor(-half / s)
    d_hi = (half + s - 1) // s             # floor((half + s - 1) / s)
    d_offsets = list(range(d_lo, d_hi + 1))
    lanes = np.arange(length)
    coef = np.zeros((len(d_offsets), length), np.float32)
    for di, d in enumerate(d_offsets):
        c_per_res = np.zeros((s,), np.float64)
        for r in range(s):
            k_lo = half - r + s * d
            for k in range(max(0, k_lo), min(ks, k_lo + s)):
                c_per_res[r] += float(lpf_taps[k])
        vals = c_per_res[lanes % s]
        valid = (lanes + s * d >= 0) & (lanes + s * d < length)
        coef[di] = np.where(valid, vals, 0.0)
    return tuple(d_offsets), coef


# ----------------------------------------------------------------------------
# Pallas kernel factory: whole UNetLayer forward for TB batch elements / step
# ----------------------------------------------------------------------------
def make_unet_layer_kernel(dim: int, scale: int, d_offsets):
    D = dim
    s = scale
    KS = 2 * s - 1            # skip-conv kernel size
    PAD = s - 1               # skip-conv halo
    f32 = jnp.float32

    def pad_lanes(z, amount):
        if amount == 0:
            return z
        zeros = jnp.zeros((z.shape[0], amount), z.dtype)
        return jnp.concatenate([zeros, z, zeros], axis=1)

    def rsum(z):                              # full (channel, length) reduction
        return jnp.sum(z, axis=(0, 1), keepdims=True)

    def rstd_from(sum_sq, n, mu):
        # single-pass variance; clamp guards against catastrophic cancellation
        # (accepted risk vs. a second full pass -- see perf review).
        var = jnp.maximum(sum_sq / n - mu * mu, 0.0)
        return jax.lax.rsqrt(var + EPS)

    def shift_lanes(z, delta, length):
        # result[:, l] = z[:, (l + delta) mod L] -- lane rotate on the XLU slot.
        if delta % length == 0:
            return z
        return pltpu.roll(z, (-delta) % length, axis=1)

    def kernel(x_ref, pa_ref, pb_ref, skipw_ref, w1x1_ref, bias_ref, coef_ref,
               o_ref):
        TB = x_ref.shape[0]
        L = x_ref.shape[2]
        n1 = float(D * L)
        n2 = float(2 * D * L)

        # ---- batch-independent weights: load once per grid step -------------
        w_skip = skipw_ref[...].astype(f32)   # (D, KS*D)  im2col skip-conv weight
        w1x1 = w1x1_ref[...].astype(f32)      # (5D, D)    split 1x1-conv weights
        bias = bias_ref[...].astype(f32)      # (4D, 1)    packed biases
        coef = coef_ref[...].astype(f32)      # (ND, L)    combined LPF coeffs

        skip_b = bias[0:D]
        g1b = bias[D:2 * D]
        g2b = bias[2 * D:3 * D]
        ob = bias[3 * D:4 * D]

        g1w_u = w1x1[0:D]          # 1x1 gate conv, `up` half
        g1w_s = w1x1[D:2 * D]      # 1x1 gate conv, `skip` half
        g2w = w1x1[2 * D:3 * D]
        ow_u = w1x1[3 * D:4 * D]   # out conv, `up` half
        ow_m = w1x1[4 * D:5 * D]   # out conv, `mix` half

        # residue of each lane mod s (hoisted out of the batch loop)
        res = jax.lax.broadcasted_iota(jnp.int32, (D, L), 1) % s

        # static loop over the TB elements in this block (amortizes grid-step
        # overhead; every element's work is independent).
        for e in range(TB):
            x = x_ref[e].astype(f32)           # (D, L)
            pa = pa_ref[e].astype(f32)         # (4D, 1) column FiLM proj (norm1/2)
            pb = pb_ref[e].astype(f32)         # (8, D)  row    FiLM proj (norm3/4)

            # ---- pre: identity
            # TODO(synk): plug in the real caller-injected `pre` submodule.

            # ---- norm1 (FiLM as z*a + b, per-channel a/b computed once) -----
            s_x = rsum(x)
            q_x = rsum(x * x)
            mu1 = s_x / n1
            r1 = rstd_from(q_x, n1, mu1)
            a1 = r1 * (1.0 + pa[0:D])          # (D, 1)
            b1 = pa[D:2 * D] - mu1 * a1
            xn1 = x * a1 + b1

            # ---- skip Conv1d(D, D, 2s-1, pad s-1): ONE (D,KS*D)@(KS*D,L) dot
            xp = pad_lanes(xn1, PAD)                           # zero halo
            stacked = jnp.concatenate(
                [xp[:, k:k + L] for k in range(KS)], axis=0)   # (KS*D, L)
            skip = jnp.dot(w_skip, stacked,
                           preferred_element_type=f32) + skip_b

            # ---- down: AvgPool1d(s, s) kept in its s-replicated length-L form
            #      pooled[:, l] == AvgPool(x)[:, l // s]; lane shifts on the XLU.
            #      Wrapped lanes are never selected (groups are s-aligned).
            shifted = {d: shift_lanes(x, d, L) for d in range(-(s - 1), s)}
            accs = []
            for r in range(s):
                acc_r = shifted[0 - r]
                for m in range(1, s):
                    acc_r = acc_r + shifted[m - r]
                accs.append(acc_r)
            pooled = accs[s - 1]
            for r in range(s - 2, -1, -1):
                pooled = jnp.where(res == r, accs[r], pooled)
            pooled = pooled * (1.0 / s)

            # ---- norm2 (AvgPool preserves the global mean -> reuse sum(x);
            #      stats of the replicated form == stats of the pooled form,
            #      FiLM is per-channel so applying it on the expanded form is exact)
            mu2 = s_x / n1
            q_p = rsum(pooled * pooled)
            r2 = rstd_from(q_p, n1, mu2)
            a2 = r2 * (1.0 + pa[2 * D:3 * D])
            b2 = pa[3 * D:4 * D] - mu2 * a2
            midx = pooled * a2 + b2
            # ---- middle: identity
            # TODO(synk): plug in the real caller-injected `middle` submodule.

            # ---- up: nearest-repeat + 17-tap Kaiser LPF with taps pre-combined
            #      per pooled sample -> len(d_offsets) stride-s shifted MACs;
            #      conv zero-padding is baked into the coefficient rows.
            up = coef[0:1, :] * shift_lanes(midx, s * d_offsets[0], L)
            for di in range(1, len(d_offsets)):
                z = shift_lanes(midx, s * d_offsets[di], L)
                up = up + coef[di:di + 1, :] * z

            # ---- joint GroupNorm(1, 2D) stats (concat-free); up sums reused.
            s_up = rsum(up)
            q_up = rsum(up * up)
            s_sk = rsum(skip)
            q_sk = rsum(skip * skip)
            mu3 = (s_up + s_sk) / n2
            r3 = rstd_from(q_up + q_sk, n2, mu3)

            # ---- norm3 FOLDED into the 1x1 gate conv (exact: no spatial taps)
            a3u = r3 * (1.0 + pb[0:1])          # (1, D) column scales, up half
            b3u = pb[2:3] - mu3 * a3u
            a3s = r3 * (1.0 + pb[1:2])          # skip half
            b3s = pb[3:4] - mu3 * a3s
            g1b_eff = (jnp.sum(g1w_u * b3u, axis=1, keepdims=True)
                       + jnp.sum(g1w_s * b3s, axis=1, keepdims=True) + g1b)
            g1 = (jnp.dot(g1w_u * a3u, up, preferred_element_type=f32)
                  + jnp.dot(g1w_s * a3s, skip, preferred_element_type=f32)
                  + g1b_eff)
            g1 = g1 * jax.nn.sigmoid(g1)        # SiLU
            gate = jnp.dot(g2w, g1, preferred_element_type=f32) + g2b
            mix = skip * gate

            # ---- norm4 FOLDED into the 1x1 out conv
            s_mx = rsum(mix)
            q_mx = rsum(mix * mix)
            mu4 = (s_up + s_mx) / n2
            r4 = rstd_from(q_up + q_mx, n2, mu4)
            a4u = r4 * (1.0 + pb[4:5])
            b4u = pb[6:7] - mu4 * a4u
            a4m = r4 * (1.0 + pb[5:6])
            b4m = pb[7:8] - mu4 * a4m
            ob_eff = (jnp.sum(ow_u * b4u, axis=1, keepdims=True)
                      + jnp.sum(ow_m * b4m, axis=1, keepdims=True) + ob)
            out = (jnp.dot(ow_u * a4u, up, preferred_element_type=f32)
                   + jnp.dot(ow_m * a4m, mix, preferred_element_type=f32)
                   + ob_eff)

            o_ref[e] = out.astype(o_ref.dtype)
        # TODO(synk): cast MXU operands to bf16 on v6e/v7x at production D
        # (negligible at D=8, kept f32 for parity with the f32 reference).

    return kernel


# ----------------------------------------------------------------------------
# wrapper: host-side packing (FiLM projections, weights, LPF coeffs) + pallas_call
# ----------------------------------------------------------------------------
def unet_layer(x, t, prm, scale, lpf_taps, batch_tile=None):
    B, D, L = x.shape
    assert L % scale == 0, "L must be divisible by scale (AvgPool/repeat semantics)"
    s = scale
    KS = 2 * s - 1
    if batch_tile is None:
        # amortize the per-grid-step overhead by taking the whole (tiny) batch
        # per step; on v7x keep >=2 "parallel" steps instead (batch_tile=B//2).
        batch_tile = B
    assert B % batch_tile == 0
    hi = jax.lax.Precision.HIGHEST

    # combined (residue-aware, boundary-masked) LPF coefficients
    d_offsets, coef_np = _combined_lpf_coeffs(np.asarray(lpf_taps, np.float32), s, L)
    lpf_coef = jnp.asarray(coef_np)                                 # (ND, L)

    # FiLM projections depend only on t -> precompute in XLA.
    def proj(w, b):
        return jnp.einsum('bt,ct->bc', t, w, precision=hi) + b[None, :]

    p1 = proj(prm['f1w'], prm['f1b'])      # (B, 2D)  [sc, sh] for norm1
    p2 = proj(prm['f2w'], prm['f2b'])      # (B, 2D)  for norm2
    p3 = proj(prm['f3w'], prm['f3b'])      # (B, 4D)  [sc_u, sc_s, sh_u, sh_s]
    p4 = proj(prm['f4w'], prm['f4b'])      # (B, 4D)  [sc_u, sc_m, sh_u, sh_m]

    # norm1/norm2 need per-channel COLUMN vectors (broadcast over lanes):
    proj_a = jnp.concatenate([p1, p2], axis=1)[..., None].astype(jnp.float32)  # (B,4D,1)
    # norm3/norm4 are folded into 1x1 weights -> lane-major ROW vectors:
    proj_b = jnp.stack(
        [p3[:, :D], p3[:, D:2 * D], p3[:, 2 * D:3 * D], p3[:, 3 * D:],
         p4[:, :D], p4[:, D:2 * D], p4[:, 2 * D:3 * D], p4[:, 3 * D:]],
        axis=1).astype(jnp.float32)                                             # (B,8,D)

    # skip conv taps as an im2col weight: Wf[o, k*D + i] = skip_w[o, i, k]
    skip_w = jnp.transpose(prm['skip_w'], (0, 2, 1)).reshape(D, KS * D)   # (D, KS*D)
    # split 1x1-conv weights (no in-kernel concat of activations):
    w1x1 = jnp.concatenate(
        [prm['g1w'][:, :D], prm['g1w'][:, D:], prm['g2w'],
         prm['ow'][:, :D], prm['ow'][:, D:]], axis=0)                     # (5D, D)
    biases = jnp.concatenate(
        [prm['skip_b'], prm['g1b'], prm['g2b'], prm['ob']],
        axis=0)[:, None]                                                  # (4D, 1)

    kernel = make_unet_layer_kernel(D, s, d_offsets)

    def const_spec(a):
        zeros = (0,) * a.ndim
        # TODO(synk): on v7x add pipeline_mode=pl.Buffered(1) for these
        # constant-index blocks to reclaim VMEM headroom.
        return pl.BlockSpec(a.shape, lambda b, _z=zeros: _z)

    TB = batch_tile
    in_specs = [
        pl.BlockSpec((TB, D, L), lambda b: (b, 0, 0)),        # x, per batch tile
        pl.BlockSpec((TB, 4 * D, 1), lambda b: (b, 0, 0)),    # FiLM proj (columns)
        pl.BlockSpec((TB, 8, D), lambda b: (b, 0, 0)),        # FiLM proj (rows)
        const_spec(skip_w),
        const_spec(w1x1),
        const_spec(biases),
        const_spec(lpf_coef),
    ]

    return pl.pallas_call(
        kernel,
        out_shape=jax.ShapeDtypeStruct((B, D, L), jnp.float32),
        grid_spec=pltpu.PrefetchScalarGridSpec(
            num_scalar_prefetch=0,
            grid=(B // TB,),
            in_specs=in_specs,
            out_specs=pl.BlockSpec((TB, D, L), lambda b: (b, 0, 0)),
        ),
        compiler_params=pltpu.CompilerParams(dimension_semantics=("parallel",)),
    )(x, proj_a, proj_b, skip_w, w1x1, biases, lpf_coef)


# ----------------------------------------------------------------------------
# pure-JAX reference (for correctness check)
# ----------------------------------------------------------------------------
def reference_forward(x, t, prm, scale, lpf_k):
    hi = jax.lax.Precision.HIGHEST
    s = scale
    B, D, L = x.shape

    def film(z, w, b):
        mu = z.mean(axis=(1, 2), keepdims=True)
        var = ((z - mu) ** 2).mean(axis=(1, 2), keepdims=True)
        zn = (z - mu) / jnp.sqrt(var + EPS)
        proj = (jnp.einsum('ct,bt->bc', w, t, precision=hi) + b[None, :])[..., None]
        c = z.shape[1]
        return zn * (1.0 + proj[:, :c]) + proj[:, c:]

    def conv1d(z, w, b, pad, groups=1):
        y = jax.lax.conv_general_dilated(
            z, w, window_strides=(1,), padding=[(pad, pad)],
            dimension_numbers=('NCH', 'OIH', 'NCH'),
            feature_group_count=groups, precision=hi)
        return y + b[None, :, None]

    def conv1x1(z, w, b):
        return jnp.einsum('oi,bil->bol', w, z, precision=hi) + b[None, :, None]

    # pre = identity
    xn1 = film(x, prm['f1w'], prm['f1b'])
    skip = conv1d(xn1, prm['skip_w'], prm['skip_b'], pad=s - 1)
    down = x.reshape(B, D, L // s, s).mean(-1)
    mid = film(down, prm['f2w'], prm['f2b'])          # middle = identity
    up_raw = jnp.repeat(mid, s, axis=-1)
    lpf_w = jnp.broadcast_to(lpf_k[None, None, :], (D, 1, lpf_k.shape[0]))
    up = conv1d(up_raw, lpf_w, jnp.zeros((D,), jnp.float32),
                pad=lpf_k.shape[0] // 2, groups=D)
    z3 = film(jnp.concatenate([up, skip], axis=1), prm['f3w'], prm['f3b'])
    g1 = conv1x1(z3, prm['g1w'], prm['g1b'])
    g1 = g1 * jax.nn.sigmoid(g1)
    gate = conv1x1(g1, prm['g2w'], prm['g2b'])
    mix = skip * gate
    z4 = film(jnp.concatenate([up, mix], axis=1), prm['f4w'], prm['f4b'])
    return conv1x1(z4, prm['ow'], prm['ob'])


# ----------------------------------------------------------------------------
# main
# ----------------------------------------------------------------------------
if __name__ == "__main__":
    # L is a multiple of 128 so the output block is lane-dense.
    B, D, T, L, SCALE = 2, 8, 16, 256, 2
    KS = 2 * SCALE - 1                                # skip conv kernel size

    key = jax.random.PRNGKey(0)
    ks = jax.random.split(key, 24)

    def rnd(k, shape, sd=0.2):
        return jax.random.normal(k, shape, jnp.float32) * sd

    x = rnd(ks[0], (B, D, L), 1.0)
    t = rnd(ks[1], (B, T), 1.0)

    prm = {
        'f1w': rnd(ks[2], (2 * D, T), 0.1),  'f1b': rnd(ks[3], (2 * D,), 0.1),
        'f2w': rnd(ks[4], (2 * D, T), 0.1),  'f2b': rnd(ks[5], (2 * D,), 0.1),
        'f3w': rnd(ks[6], (4 * D, T), 0.1),  'f3b': rnd(ks[7], (4 * D,), 0.1),
        'f4w': rnd(ks[8], (4 * D, T), 0.1),  'f4b': rnd(ks[9], (4 * D,), 0.1),
        'skip_w': rnd(ks[10], (D, D, KS)),   'skip_b': rnd(ks[11], (D,)),
        'g1w': rnd(ks[12], (D, 2 * D)),      'g1b': rnd(ks[13], (D,)),
        'g2w': rnd(ks[14], (D, D)),          'g2b': rnd(ks[15], (D,)),
        'ow':  rnd(ks[16], (D, 2 * D)),      'ob':  rnd(ks[17], (D,)),
    }

    lpf_np = _kaiser_lpf_kernel(SCALE)                # 17 taps

    out = unet_layer(x, t, prm, SCALE, lpf_np)
    out = jax.block_until_ready(out)

    ref = jax.block_until_ready(
        reference_forward(x, t, prm, SCALE, jnp.asarray(lpf_np)))
    np.testing.assert_allclose(np.asarray(out), np.asarray(ref), rtol=1e-2, atol=1e-2)

    print("KERNEL_OK")
</pallas_src>

<mosaic_0001>
module attributes {stable_mosaic.version = 11 : i64} {
  func.func @kernel(%arg0: i32, %arg1: memref<2x8x256xf32, #tpu.memory_space<vmem>>, %arg2: memref<2x32x1xf32, #tpu.memory_space<vmem>>, %arg3: memref<2x8x8xf32, #tpu.memory_space<vmem>>, %arg4: memref<8x24xf32, #tpu.memory_space<vmem>>, %arg5: memref<40x8xf32, #tpu.memory_space<vmem>>, %arg6: memref<32x1xf32, #tpu.memory_space<vmem>>, %arg7: memref<9x256xf32, #tpu.memory_space<vmem>>, %arg8: memref<2x8x256xf32, #tpu.memory_space<vmem>>) attributes {dimension_semantics = [#tpu.dimension_semantics<parallel>], iteration_bounds = array<i64: 1>, scalar_prefetch = 0 : i64, scratch_operands = 0 : i64, tpu.core_type = #tpu.core_type<tc>, window_params = [{transform_indices = @transform_0, window_bounds = array<i64: 2, 8, 256>}, {transform_indices = @transform_1, window_bounds = array<i64: 2, 32, 1>}, {transform_indices = @transform_2, window_bounds = array<i64: 2, 8, 8>}, {pipeline_mode = #tpu.pipeline_mode<synchronous>, transform_indices = @transform_3, window_bounds = array<i64: 8, 24>}, {pipeline_mode = #tpu.pipeline_mode<synchronous>, transform_indices = @transform_4, window_bounds = array<i64: 40, 8>}, {pipeline_mode = #tpu.pipeline_mode<synchronous>, transform_indices = @transform_5, window_bounds = array<i64: 32, 1>}, {pipeline_mode = #tpu.pipeline_mode<synchronous>, transform_indices = @transform_6, window_bounds = array<i64: 9, 256>}, {transform_indices = @transform_7, window_bounds = array<i64: 2, 8, 256>}]} {
    %c0 = arith.constant 0 : index
    %c0_0 = arith.constant 0 : index
    %0 = vector.load %arg4[%c0, %c0_0] : memref<8x24xf32, #tpu.memory_space<vmem>>, vector<8x24xf32>
    %c0_1 = arith.constant 0 : index
    %c0_2 = arith.constant 0 : index
    %1 = vector.load %arg5[%c0_1, %c0_2] : memref<40x8xf32, #tpu.memory_space<vmem>>, vector<40x8xf32>
    %c0_3 = arith.constant 0 : index
    %c0_4 = arith.constant 0 : index
    %2 = vector.load %arg6[%c0_3, %c0_4] : memref<32x1xf32, #tpu.memory_space<vmem>>, vector<32x1xf32>
    %c0_5 = arith.constant 0 : index
    %c0_6 = arith.constant 0 : index
    %3 = vector.load %arg7[%c0_5, %c0_6] : memref<9x256xf32, #tpu.memory_space<vmem>>, vector<9x256xf32>
    %4 = vector.extract_strided_slice %2 {offsets = [0, 0], sizes = [8, 1], strides = [1, 1]} : vector<32x1xf32> to vector<8x1xf32>
    %5 = vector.extract_strided_slice %2 {offsets = [8, 0], sizes = [8, 1], strides = [1, 1]} : vector<32x1xf32> to vector<8x1xf32>
    %6 = vector.extract_strided_slice %2 {offsets = [16, 0], sizes = [8, 1], strides = [1, 1]} : vector<32x1xf32> to vector<8x1xf32>
    %7 = vector.extract_strided_slice %2 {offsets = [24, 0], sizes = [8, 1], strides = [1, 1]} : vector<32x1xf32> to vector<8x1xf32>
    %8 = vector.extract_strided_slice %1 {offsets = [0, 0], sizes = [8, 8], strides = [1, 1]} : vector<40x8xf32> to vector<8x8xf32>
    %9 = vector.extract_strided_slice %1 {offsets = [8, 0], sizes = [8, 8], strides = [1, 1]} : vector<40x8xf32> to vector<8x8xf32>
    %10 = vector.extract_strided_slice %1 {offsets = [16, 0], sizes = [8, 8], strides = [1, 1]} : vector<40x8xf32> to vector<8x8xf32>
    %11 = vector.extract_strided_slice %1 {offsets = [24, 0], sizes = [8, 8], strides = [1, 1]} : vector<40x8xf32> to vector<8x8xf32>
    %12 = vector.extract_strided_slice %1 {offsets = [32, 0], sizes = [8, 8], strides = [1, 1]} : vector<40x8xf32> to vector<8x8xf32>
    %13 = tpu.iota {dimensions = array<i32: 1>} : vector<8x256xi32>
    %c2_i32 = arith.constant 2 : i32
    %c0_i32 = arith.constant 0 : i32
    %14 = arith.cmpi eq, %c2_i32, %c0_i32 : i32
    %c1_i32 = arith.constant 1 : i32
    %15 = arith.select %14, %c1_i32, %c2_i32 : i32
    %16 = vector.broadcast %15 : i32 to vector<8x256xi32>
    %17 = arith.remsi %13, %16 : vector<8x256xi32>
    %c0_i32_7 = arith.constant 0 : i32
    %18 = vector.broadcast %c0_i32_7 : i32 to vector<8x256xi32>
    %19 = arith.cmpi ne, %17, %18 : vector<8x256xi32>
    %c0_i32_8 = arith.constant 0 : i32
    %20 = vector.broadcast %c0_i32_8 : i32 to vector<8x256xi32>
    %21 = arith.cmpi slt, %17, %20 : vector<8x256xi32>
    %c0_i32_9 = arith.constant 0 : i32
    %22 = arith.cmpi slt, %15, %c0_i32_9 : i32
    %23 = vector.broadcast %22 : i1 to vector<8x256xi1>
    %24 = vector.broadcast %23 : vector<8x256xi1> to vector<8x256xi1>
    %25 = arith.xori %21, %24 : vector<8x256xi1>
    %26 = arith.andi %25, %19 : vector<8x256xi1>
    %27 = vector.broadcast %15 : i32 to vector<8x256xi32>
    %28 = arith.addi %17, %27 : vector<8x256xi32>
    %29 = arith.select %26, %28, %17 : vector<8x256xi1>, vector<8x256xi32>
    %c0_10 = arith.constant 0 : index
    %c0_11 = arith.constant 0 : index
    %c0_12 = arith.constant 0 : index
    %30 = vector.load %arg1[%c0_10, %c0_11, %c0_12] : memref<2x8x256xf32, #tpu.memory_space<vmem>>, vector<1x8x256xf32>
    %31 = vector.shape_cast %30 : vector<1x8x256xf32> to vector<8x256xf32>
    %c0_13 = arith.constant 0 : index
    %c0_14 = arith.constant 0 : index
    %c0_15 = arith.constant 0 : index
    %32 = vector.load %arg2[%c0_13, %c0_14, %c0_15] : memref<2x32x1xf32, #tpu.memory_space<vmem>>, vector<1x32x1xf32>
    %33 = vector.shape_cast %32 : vector<1x32x1xf32> to vector<32x1xf32>
    %c0_16 = arith.constant 0 : index
    %c0_17 = arith.constant 0 : index
    %c0_18 = arith.constant 0 : index
    %34 = vector.load %arg3[%c0_16, %c0_17, %c0_18] : memref<2x8x8xf32, #tpu.memory_space<vmem>>, vector<1x8x8xf32>
    %35 = vector.shape_cast %34 : vector<1x8x8xf32> to vector<8x8xf32>
    %36 = vector.shape_cast %31 : vector<8x256xf32> to vector<1x8x256xf32>
    %cst = arith.constant dense<0.000000e+00> : vector<1xf32>
    %37 = vector.multi_reduction <add>, %36, %cst [1, 2] : vector<1x8x256xf32> to vector<1xf32>
    %38 = vector.shape_cast %37 : vector<1xf32> to vector<1x1x1xf32>
    %39 = vector.extract %38[0, 0, 0] : f32 from vector<1x1x1xf32>
    %40 = vector.broadcast %39 : f32 to vector<1x1xf32>
    %41 = arith.mulf %31, %31 : vector<8x256xf32>
    %42 = vector.shape_cast %41 : vector<8x256xf32> to vector<1x8x256xf32>
    %cst_19 = arith.constant dense<0.000000e+00> : vector<1xf32>
    %43 = vector.multi_reduction <add>, %42, %cst_19 [1, 2] : vector<1x8x256xf32> to vector<1xf32>
    %44 = vector.shape_cast %43 : vector<1xf32> to vector<1x1x1xf32>
    %45 = vector.extract %44[0, 0, 0] : f32 from vector<1x1x1xf32>
    %46 = vector.broadcast %45 : f32 to vector<1x1xf32>
    %cst_20 = arith.constant 2.048000e+03 : f32
    %47 = vector.broadcast %cst_20 : f32 to vector<1x1xf32>
    %48 = arith.divf %40, %47 : vector<1x1xf32>
    %cst_21 = arith.constant 2.048000e+03 : f32
    %49 = vector.broadcast %cst_21 : f32 to vector<1x1xf32>
    %50 = arith.divf %46, %49 : vector<1x1xf32>
    %51 = arith.mulf %48, %48 : vector<1x1xf32>
    %52 = arith.subf %50, %51 : vector<1x1xf32>
    %cst_22 = arith.constant 0.000000e+00 : f32
    %53 = vector.broadcast %cst_22 : f32 to vector<1x1xf32>
    %54 = arith.maximumf %52, %53 : vector<1x1xf32>
    %cst_23 = arith.constant 9.99999974E-6 : f32
    %55 = vector.broadcast %cst_23 : f32 to vector<1x1xf32>
    %56 = arith.addf %54, %55 : vector<1x1xf32>
    %57 = math.rsqrt %56 : vector<1x1xf32>
    %58 = vector.extract_strided_slice %33 {offsets = [0, 0], sizes = [8, 1], strides = [1, 1]} : vector<32x1xf32> to vector<8x1xf32>
    %cst_24 = arith.constant 1.000000e+00 : f32
    %59 = vector.broadcast %cst_24 : f32 to vector<8x1xf32>
    %60 = arith.addf %59, %58 : vector<8x1xf32>
    %61 = vector.broadcast %57 : vector<1x1xf32> to vector<8x1xf32>
    %62 = arith.mulf %61, %60 : vector<8x1xf32>
    %63 = vector.extract_strided_slice %33 {offsets = [8, 0], sizes = [8, 1], strides = [1, 1]} : vector<32x1xf32> to vector<8x1xf32>
    %64 = vector.broadcast %48 : vector<1x1xf32> to vector<8x1xf32>
    %65 = arith.mulf %64, %62 : vector<8x1xf32>
    %66 = arith.subf %63, %65 : vector<8x1xf32>
    %67 = vector.broadcast %62 : vector<8x1xf32> to vector<8x256xf32>
    %68 = arith.mulf %31, %67 : vector<8x256xf32>
    %69 = vector.broadcast %66 : vector<8x1xf32> to vector<8x256xf32>
    %70 = arith.addf %68, %69 : vector<8x256xf32>
    %cst_25 = arith.constant 0.000000e+00 : f32
    %71 = vector.broadcast %cst_25 : f32 to vector<8x1xf32>
    %72 = tpu.concatenate %71, %70, %71 in 1 : vector<8x1xf32>, vector<8x256xf32>, vector<8x1xf32> -> vector<8x258xf32>
    %73 = vector.extract_strided_slice %72 {offsets = [0, 0], sizes = [8, 256], strides = [1, 1]} : vector<8x258xf32> to vector<8x256xf32>
    %74 = vector.extract_strided_slice %72 {offsets = [0, 1], sizes = [8, 256], strides = [1, 1]} : vector<8x258xf32> to vector<8x256xf32>
    %75 = vector.extract_strided_slice %72 {offsets = [0, 2], sizes = [8, 256], strides = [1, 1]} : vector<8x258xf32> to vector<8x256xf32>
    %76 = tpu.concatenate %73, %74, %75 in 0 : vector<8x256xf32>, vector<8x256xf32>, vector<8x256xf32> -> vector<24x256xf32>
    %cst_26 = arith.constant dense<0.000000e+00> : vector<8x256xf32>
    %77 = tpu.matmul %0, %76, %cst_26 {dimension_numbers = #tpu.dot_dimension_numbers<[1], [0], [0], [1], [0, 0, 1, 1], [], []>} : vector<8x24xf32>, vector<24x256xf32>, vector<8x256xf32> -> vector<8x256xf32>
    %78 = vector.broadcast %4 : vector<8x1xf32> to vector<8x256xf32>
    %79 = arith.addf %77, %78 : vector<8x256xf32>
    %c1_i32_27 = arith.constant 1 : i32
    %80 = tpu.dynamic_rotate %31 by %c1_i32_27 dim 1 : vector<8x256xf32>, i32 -> vector<8x256xf32>
    %c255_i32 = arith.constant 255 : i32
    %81 = tpu.dynamic_rotate %31 by %c255_i32 dim 1 : vector<8x256xf32>, i32 -> vector<8x256xf32>
    %82 = arith.addf %31, %81 : vector<8x256xf32>
    %83 = arith.addf %80, %31 : vector<8x256xf32>
    %c0_i32_28 = arith.constant 0 : i32
    %84 = vector.broadcast %c0_i32_28 : i32 to vector<8x256xi32>
    %85 = arith.cmpi eq, %29, %84 : vector<8x256xi32>
    %86 = arith.select %85, %82, %83 : vector<8x256xi1>, vector<8x256xf32>
    %cst_29 = arith.constant 5.000000e-01 : f32
    %87 = vector.broadcast %cst_29 : f32 to vector<8x256xf32>
    %88 = arith.mulf %86, %87 : vector<8x256xf32>
    %cst_30 = arith.constant 2.048000e+03 : f32
    %89 = vector.broadcast %cst_30 : f32 to vector<1x1xf32>
    %90 = arith.divf %40, %89 : vector<1x1xf32>
    %91 = arith.mulf %88, %88 : vector<8x256xf32>
    %92 = vector.shape_cast %91 : vector<8x256xf32> to vector<1x8x256xf32>
    %cst_31 = arith.constant dense<0.000000e+00> : vector<1xf32>
    %93 = vector.multi_reduction <add>, %92, %cst_31 [1, 2] : vector<1x8x256xf32> to vector<1xf32>
    %94 = vector.shape_cast %93 : vector<1xf32> to vector<1x1x1xf32>
    %95 = vector.extract %94[0, 0, 0] : f32 from vector<1x1x1xf32>
    %96 = vector.broadcast %95 : f32 to vector<1x1xf32>
    %cst_32 = arith.constant 2.048000e+03 : f32
    %97 = vector.broadcast %cst_32 : f32 to vector<1x1xf32>
    %98 = arith.divf %96, %97 : vector<1x1xf32>
    %99 = arith.mulf %90, %90 : vector<1x1xf32>
    %100 = arith.subf %98, %99 : vector<1x1xf32>
    %cst_33 = arith.constant 0.000000e+00 : f32
    %101 = vector.broadcast %cst_33 : f32 to vector<1x1xf32>
    %102 = arith.maximumf %100, %101 : vector<1x1xf32>
    %cst_34 = arith.constant 9.99999974E-6 : f32
    %103 = vector.broadcast %cst_34 : f32 to vector<1x1xf32>
    %104 = arith.addf %102, %103 : vector<1x1xf32>
    %105 = math.rsqrt %104 : vector<1x1xf32>
    %106 = vector.extract_strided_slice %33 {offsets = [16, 0], sizes = [8, 1], strides = [1, 1]} : vector<32x1xf32> to vector<8x1xf32>
    %cst_35 = arith.constant 1.000000e+00 : f32
    %107 = vector.broadcast %cst_35 : f32 to vector<8x1xf32>
    %108 = arith.addf %107, %106 : vector<8x1xf32>
    %109 = vector.broadcast %105 : vector<1x1xf32> to vector<8x1xf32>
    %110 = arith.mulf %109, %108 : vector<8x1xf32>
    %111 = vector.extract_strided_slice %33 {offsets = [24, 0], sizes = [8, 1], strides = [1, 1]} : vector<32x1xf32> to vector<8x1xf32>
    %112 = vector.broadcast %90 : vector<1x1xf32> to vector<8x1xf32>
    %113 = arith.mulf %112, %110 : vector<8x1xf32>
    %114 = arith.subf %111, %113 : vector<8x1xf32>
    %115 = vector.broadcast %110 : vector<8x1xf32> to vector<8x256xf32>
    %116 = arith.mulf %88, %115 : vector<8x256xf32>
    %117 = vector.broadcast %114 : vector<8x1xf32> to vector<8x256xf32>
    %118 = arith.addf %116, %117 : vector<8x256xf32>
    %119 = vector.extract_strided_slice %3 {offsets = [0, 0], sizes = [1, 256], strides = [1, 1]} : vector<9x256xf32> to vector<1x256xf32>
    %c8_i32 = arith.constant 8 : i32
    %120 = tpu.dynamic_rotate %118 by %c8_i32 dim 1 : vector<8x256xf32>, i32 -> vector<8x256xf32>
    %121 = vector.broadcast %119 : vector<1x256xf32> to vector<8x256xf32>
    %122 = arith.mulf %121, %120 : vector<8x256xf32>
    %c6_i32 = arith.constant 6 : i32
    %123 = tpu.dynamic_rotate %118 by %c6_i32 dim 1 : vector<8x256xf32>, i32 -> vector<8x256xf32>
    %124 = vector.extract_strided_slice %3 {offsets = [1, 0], sizes = [1, 256], strides = [1, 1]} : vector<9x256xf32> to vector<1x256xf32>
    %125 = vector.broadcast %124 : vector<1x256xf32> to vector<8x256xf32>
    %126 = arith.mulf %125, %123 : vector<8x256xf32>
    %127 = arith.addf %122, %126 : vector<8x256xf32>
    %c4_i32 = arith.constant 4 : i32
    %128 = tpu.dynamic_rotate %118 by %c4_i32 dim 1 : vector<8x256xf32>, i32 -> vector<8x256xf32>
    %129 = vector.extract_strided_slice %3 {offsets = [2, 0], sizes = [1, 256], strides = [1, 1]} : vector<9x256xf32> to vector<1x256xf32>
    %130 = vector.broadcast %129 : vector<1x256xf32> to vector<8x256xf32>
    %131 = arith.mulf %130, %128 : vector<8x256xf32>
    %132 = arith.addf %127, %131 : vector<8x256xf32>
    %c2_i32_36 = arith.constant 2 : i32
    %133 = tpu.dynamic_rotate %118 by %c2_i32_36 dim 1 : vector<8x256xf32>, i32 -> vector<8x256xf32>
    %134 = vector.extract_strided_slice %3 {offsets = [3, 0], sizes = [1, 256], strides = [1, 1]} : vector<9x256xf32> to vector<1x256xf32>
    %135 = vector.broadcast %134 : vector<1x256xf32> to vector<8x256xf32>
    %136 = arith.mulf %135, %133 : vector<8x256xf32>
    %137 = arith.addf %132, %136 : vector<8x256xf32>
    %138 = vector.extract_strided_slice %3 {offsets = [4, 0], sizes = [1, 256], strides = [1, 1]} : vector<9x256xf32> to vector<1x256xf32>
    %139 = vector.broadcast %138 : vector<1x256xf32> to vector<8x256xf32>
    %140 = arith.mulf %139, %118 : vector<8x256xf32>
    %141 = arith.addf %137, %140 : vector<8x256xf32>
    %c254_i32 = arith.constant 254 : i32
    %142 = tpu.dynamic_rotate %118 by %c254_i32 dim 1 : vector<8x256xf32>, i32 -> vector<8x256xf32>
    %143 = vector.extract_strided_slice %3 {offsets = [5, 0], sizes = [1, 256], strides = [1, 1]} : vector<9x256xf32> to vector<1x256xf32>
    %144 = vector.broadcast %143 : vector<1x256xf32> to vector<8x256xf32>
    %145 = arith.mulf %144, %142 : vector<8x256xf32>
    %146 = arith.addf %141, %145 : vector<8x256xf32>
    %c252_i32 = arith.constant 252 : i32
    %147 = tpu.dynamic_rotate %118 by %c252_i32 dim 1 : vector<8x256xf32>, i32 -> vector<8x256xf32>
    %148 = vector.extract_strided_slice %3 {offsets = [6, 0], sizes = [1, 256], strides = [1, 1]} : vector<9x256xf32> to vector<1x256xf32>
    %149 = vector.broadcast %148 : vector<1x256xf32> to vector<8x256xf32>
    %150 = arith.mulf %149, %147 : vector<8x256xf32>
    %151 = arith.addf %146, %150 : vector<8x256xf32>
    %c250_i32 = arith.constant 250 : i32
    %152 = tpu.dynamic_rotate %118 by %c250_i32 dim 1 : vector<8x256xf32>, i32 -> vector<8x256xf32>
    %153 = vector.extract_strided_slice %3 {offsets = [7, 0], sizes = [1, 256], strides = [1, 1]} : vector<9x256xf32> to vector<1x256xf32>
    %154 = vector.broadcast %153 : vector<1x256xf32> to vector<8x256xf32>
    %155 = arith.mulf %154, %152 : vector<8x256xf32>
    %156 = arith.addf %151, %155 : vector<8x256xf32>
    %c248_i32 = arith.constant 248 : i32
    %157 = tpu.dynamic_rotate %118 by %c248_i32 dim 1 : vector<8x256xf32>, i32 -> vector<8x256xf32>
    %158 = vector.extract_strided_slice %3 {offsets = [8, 0], sizes = [1, 256], strides = [1, 1]} : vector<9x256xf32> to vector<1x256xf32>
    %159 = vector.broadcast %158 : vector<1x256xf32> to vector<8x256xf32>
    %160 = arith.mulf %159, %157 : vector<8x256xf32>
    %161 = arith.addf %156, %160 : vector<8x256xf32>
    %162 = vector.shape_cast %161 : vector<8x256xf32> to vector<1x8x256xf32>
    %cst_37 = arith.constant dense<0.000000e+00> : vector<1xf32>
    %163 = vector.multi_reduction <add>, %162, %cst_37 [1, 2] : vector<1x8x256xf32> to vector<1xf32>
    %164 = vector.shape_cast %163 : vector<1xf32> to vector<1x1x1xf32>
    %165 = vector.extract %164[0, 0, 0] : f32 from vector<1x1x1xf32>
    %166 = vector.broadcast %165 : f32 to vector<1x1xf32>
    %167 = arith.mulf %161, %161 : vector<8x256xf32>
    %168 = vector.shape_cast %167 : vector<8x256xf32> to vector<1x8x256xf32>
    %cst_38 = arith.constant dense<0.000000e+00> : vector<1xf32>
    %169 = vector.multi_reduction <add>, %168, %cst_38 [1, 2] : vector<1x8x256xf32> to vector<1xf32>
    %170 = vector.shape_cast %169 : vector<1xf32> to vector<1x1x1xf32>
    %171 = vector.extract %170[0, 0, 0] : f32 from vector<1x1x1xf32>
    %172 = vector.broadcast %171 : f32 to vector<1x1xf32>
    %173 = vector.shape_cast %79 : vector<8x256xf32> to vector<1x8x256xf32>
    %cst_39 = arith.constant dense<0.000000e+00> : vector<1xf32>
    %174 = vector.multi_reduction <add>, %173, %cst_39 [1, 2] : vector<1x8x256xf32> to vector<1xf32>
    %175 = vector.shape_cast %174 : vector<1xf32> to vector<1x1x1xf32>
    %176 = vector.extract %175[0, 0, 0] : f32 from vector<1x1x1xf32>
    %177 = vector.broadcast %176 : f32 to vector<1x1xf32>
    %178 = arith.mulf %79, %79 : vector<8x256xf32>
    %179 = vector.shape_cast %178 : vector<8x256xf32> to vector<1x8x256xf32>
    %cst_40 = arith.constant dense<0.000000e+00> : vector<1xf32>
    %180 = vector.multi_reduction <add>, %179, %cst_40 [1, 2] : vector<1x8x256xf32> to vector<1xf32>
    %181 = vector.shape_cast %180 : vector<1xf32> to vector<1x1x1xf32>
    %182 = vector.extract %181[0, 0, 0] : f32 from vector<1x1x1xf32>
    %183 = vector.broadcast %182 : f32 to vector<1x1xf32>
    %184 = arith.addf %166, %177 : vector<1x1xf32>
    %cst_41 = arith.constant 4.096000e+03 : f32
    %185 = vector.broadcast %cst_41 : f32 to vector<1x1xf32>
    %186 = arith.divf %184, %185 : vector<1x1xf32>
    %187 = arith.addf %172, %183 : vector<1x1xf32>
    %cst_42 = arith.constant 4.096000e+03 : f32
    %188 = vector.broadcast %cst_42 : f32 to vector<1x1xf32>
    %189 = arith.divf %187, %188 : vector<1x1xf32>
    %190 = arith.mulf %186, %186 : vector<1x1xf32>
    %191 = arith.subf %189, %190 : vector<1x1xf32>
    %cst_43 = arith.constant 0.000000e+00 : f32
    %192 = vector.broadcast %cst_43 : f32 to vector<1x1xf32>
    %193 = arith.maximumf %191, %192 : vector<1x1xf32>
    %cst_44 = arith.constant 9.99999974E-6 : f32
    %194 = vector.broadcast %cst_44 : f32 to vector<1x1xf32>
    %195 = arith.addf %193, %194 : vector<1x1xf32>
    %196 = math.rsqrt %195 : vector<1x1xf32>
    %197 = vector.extract_strided_slice %35 {offsets = [0, 0], sizes = [1, 8], strides = [1, 1]} : vector<8x8xf32> to vector<1x8xf32>
    %cst_45 = arith.constant 1.000000e+00 : f32
    %198 = vector.broadcast %cst_45 : f32 to vector<1x8xf32>
    %199 = arith.addf %198, %197 : vector<1x8xf32>
    %200 = vector.broadcast %196 : vector<1x1xf32> to vector<1x8xf32>
    %201 = arith.mulf %200, %199 : vector<1x8xf32>
    %202 = vector.extract_strided_slice %35 {offsets = [2, 0], sizes = [1, 8], strides = [1, 1]} : vector<8x8xf32> to vector<1x8xf32>
    %203 = vector.broadcast %186 : vector<1x1xf32> to vector<1x8xf32>
    %204 = arith.mulf %203, %201 : vector<1x8xf32>
    %205 = arith.subf %202, %204 : vector<1x8xf32>
    %206 = vector.extract_strided_slice %35 {offsets = [1, 0], sizes = [1, 8], strides = [1, 1]} : vector<8x8xf32> to vector<1x8xf32>
    %cst_46 = arith.constant 1.000000e+00 : f32
    %207 = vector.broadcast %cst_46 : f32 to vector<1x8xf32>
    %208 = arith.addf %207, %206 : vector<1x8xf32>
    %209 = vector.broadcast %196 : vector<1x1xf32> to vector<1x8xf32>
    %210 = arith.mulf %209, %208 : vector<1x8xf32>
    %211 = vector.extract_strided_slice %35 {offsets = [3, 0], sizes = [1, 8], strides = [1, 1]} : vector<8x8xf32> to vector<1x8xf32>
    %212 = vector.broadcast %186 : vector<1x1xf32> to vector<1x8xf32>
    %213 = arith.mulf %212, %210 : vector<1x8xf32>
    %214 = arith.subf %211, %213 : vector<1x8xf32>
    %215 = vector.broadcast %205 : vector<1x8xf32> to vector<8x8xf32>
    %216 = arith.mulf %8, %215 : vector<8x8xf32>
    %cst_47 = arith.constant dense<0.000000e+00> : vector<8xf32>
    %217 = vector.multi_reduction <add>, %216, %cst_47 [1] : vector<8x8xf32> to vector<8xf32>
    %218 = vector.shape_cast %217 : vector<8xf32> to vector<8x1xf32>
    %219 = vector.broadcast %214 : vector<1x8xf32> to vector<8x8xf32>
    %220 = arith.mulf %9, %219 : vector<8x8xf32>
    %cst_48 = arith.constant dense<0.000000e+00> : vector<8xf32>
    %221 = vector.multi_reduction <add>, %220, %cst_48 [1] : vector<8x8xf32> to vector<8xf32>
    %222 = vector.shape_cast %221 : vector<8xf32> to vector<8x1xf32>
    %223 = arith.addf %218, %222 : vector<8x1xf32>
    %224 = arith.addf %223, %5 : vector<8x1xf32>
    %225 = vector.broadcast %201 : vector<1x8xf32> to vector<8x8xf32>
    %226 = arith.mulf %8, %225 : vector<8x8xf32>
    %cst_49 = arith.constant dense<0.000000e+00> : vector<8x256xf32>
    %227 = tpu.matmul %226, %161, %cst_49 {dimension_numbers = #tpu.dot_dimension_numbers<[1], [0], [0], [1], [0, 0, 1, 1], [], []>} : vector<8x8xf32>, vector<8x256xf32>, vector<8x256xf32> -> vector<8x256xf32>
    %228 = vector.broadcast %210 : vector<1x8xf32> to vector<8x8xf32>
    %229 = arith.mulf %9, %228 : vector<8x8xf32>
    %cst_50 = arith.constant dense<0.000000e+00> : vector<8x256xf32>
    %230 = tpu.matmul %229, %79, %cst_50 {dimension_numbers = #tpu.dot_dimension_numbers<[1], [0], [0], [1], [0, 0, 1, 1], [], []>} : vector<8x8xf32>, vector<8x256xf32>, vector<8x256xf32> -> vector<8x256xf32>
    %231 = arith.addf %227, %230 : vector<8x256xf32>
    %232 = vector.broadcast %224 : vector<8x1xf32> to vector<8x256xf32>
    %233 = arith.addf %231, %232 : vector<8x256xf32>
    %234 = arith.negf %233 : vector<8x256xf32>
    %235 = math.exp %234 : vector<8x256xf32>
    %cst_51 = arith.constant 1.000000e+00 : f32
    %236 = vector.broadcast %cst_51 : f32 to vector<8x256xf32>
    %237 = arith.addf %236, %235 : vector<8x256xf32>
    %238 = arith.divf %236, %237 : vector<8x256xf32>
    %239 = arith.mulf %233, %238 : vector<8x256xf32>
    %cst_52 = arith.constant dense<0.000000e+00> : vector<8x256xf32>
    %240 = tpu.matmul %10, %239, %cst_52 {dimension_numbers = #tpu.dot_dimension_numbers<[1], [0], [0], [1], [0, 0, 1, 1], [], []>} : vector<8x8xf32>, vector<8x256xf32>, vector<8x256xf32> -> vector<8x256xf32>
    %241 = vector.broadcast %6 : vector<8x1xf32> to vector<8x256xf32>
    %242 = arith.addf %240, %241 : vector<8x256xf32>
    %243 = arith.mulf %79, %242 : vector<8x256xf32>
    %244 = vector.shape_cast %243 : vector<8x256xf32> to vector<1x8x256xf32>
    %cst_53 = arith.constant dense<0.000000e+00> : vector<1xf32>
    %245 = vector.multi_reduction <add>, %244, %cst_53 [1, 2] : vector<1x8x256xf32> to vector<1xf32>
    %246 = vector.shape_cast %245 : vector<1xf32> to vector<1x1x1xf32>
    %247 = vector.extract %246[0, 0, 0] : f32 from vector<1x1x1xf32>
    %248 = vector.broadcast %247 : f32 to vector<1x1xf32>
    %249 = arith.mulf %243, %243 : vector<8x256xf32>
    %250 = vector.shape_cast %249 : vector<8x256xf32> to vector<1x8x256xf32>
    %cst_54 = arith.constant dense<0.000000e+00> : vector<1xf32>
    %251 = vector.multi_reduction <add>, %250, %cst_54 [1, 2] : vector<1x8x256xf32> to vector<1xf32>
    %252 = vector.shape_cast %251 : vector<1xf32> to vector<1x1x1xf32>
    %253 = vector.extract %252[0, 0, 0] : f32 from vector<1x1x1xf32>
    %254 = vector.broadcast %253 : f32 to vector<1x1xf32>
    %255 = arith.addf %166, %248 : vector<1x1xf32>
    %cst_55 = arith.constant 4.096000e+03 : f32
    %256 = vector.broadcast %cst_55 : f32 to vector<1x1xf32>
    %257 = arith.divf %255, %256 : vector<1x1xf32>
    %258 = arith.addf %172, %254 : vector<1x1xf32>
    %cst_56 = arith.constant 4.096000e+03 : f32
    %259 = vector.broadcast %cst_56 : f32 to vector<1x1xf32>
    %260 = arith.divf %258, %259 : vector<1x1xf32>
    %261 = arith.mulf %257, %257 : vector<1x1xf32>
    %262 = arith.subf %260, %261 : vector<1x1xf32>
    %cst_57 = arith.constant 0.000000e+00 : f32
    %263 = vector.broadcast %cst_57 : f32 to vector<1x1xf32>
    %264 = arith.maximumf %262, %263 : vector<1x1xf32>
    %cst_58 = arith.constant 9.99999974E-6 : f32
    %265 = vector.broadcast %cst_58 : f32 to vector<1x1xf32>
    %266 = arith.addf %264, %265 : vector<1x1xf32>
    %267 = math.rsqrt %266 : vector<1x1xf32>
    %268 = vector.extract_strided_slice %35 {offsets = [4, 0], sizes = [1, 8], strides = [1, 1]} : vector<8x8xf32> to vector<1x8xf32>
    %cst_59 = arith.constant 1.000000e+00 : f32
    %269 = vector.broadcast %cst_59 : f32 to vector<1x8xf32>
    %270 = arith.addf %269, %268 : vector<1x8xf32>
    %271 = vector.broadcast %267 : vector<1x1xf32> to vector<1x8xf32>
    %272 = arith.mulf %271, %270 : vector<1x8xf32>
    %273 = vector.extract_strided_slice %35 {offsets = [6, 0], sizes = [1, 8], strides = [1, 1]} : vector<8x8xf32> to vector<1x8xf32>
    %274 = vector.broadcast %257 : vector<1x1xf32> to vector<1x8xf32>
    %275 = arith.mulf %274, %272 : vector<1x8xf32>
    %276 = arith.subf %273, %275 : vector<1x8xf32>
    %277 = vector.extract_strided_slice %35 {offsets = [5, 0], sizes = [1, 8], strides = [1, 1]} : vector<8x8xf32> to vector<1x8xf32>
    %cst_60 = arith.constant 1.000000e+00 : f32
    %278 = vector.broadcast %cst_60 : f32 to vector<1x8xf32>
    %279 = arith.addf %278, %277 : vector<1x8xf32>
    %280 = vector.broadcast %267 : vector<1x1xf32> to vector<1x8xf32>
    %281 = arith.mulf %280, %279 : vector<1x8xf32>
    %282 = vector.extract_strided_slice %35 {offsets = [7, 0], sizes = [1, 8], strides = [1, 1]} : vector<8x8xf32> to vector<1x8xf32>
    %283 = vector.broadcast %257 : vector<1x1xf32> to vector<1x8xf32>
    %284 = arith.mulf %283, %281 : vector<1x8xf32>
    %285 = arith.subf %282, %284 : vector<1x8xf32>
    %286 = vector.broadcast %276 : vector<1x8xf32> to vector<8x8xf32>
    %287 = arith.mulf %11, %286 : vector<8x8xf32>
    %cst_61 = arith.constant dense<0.000000e+00> : vector<8xf32>
    %288 = vector.multi_reduction <add>, %287, %cst_61 [1] : vector<8x8xf32> to vector<8xf32>
    %289 = vector.shape_cast %288 : vector<8xf32> to vector<8x1xf32>
    %290 = vector.broadcast %285 : vector<1x8xf32> to vector<8x8xf32>
    %291 = arith.mulf %12, %290 : vector<8x8xf32>
    %cst_62 = arith.constant dense<0.000000e+00> : vector<8xf32>
    %292 = vector.multi_reduction <add>, %291, %cst_62 [1] : vector<8x8xf32> to vector<8xf32>
    %293 = vector.shape_cast %292 : vector<8xf32> to vector<8x1xf32>
    %294 = arith.addf %289, %293 : vector<8x1xf32>
    %295 = arith.addf %294, %7 : vector<8x1xf32>
    %296 = vector.broadcast %272 : vector<1x8xf32> to vector<8x8xf32>
    %297 = arith.mulf %11, %296 : vector<8x8xf32>
    %cst_63 = arith.constant dense<0.000000e+00> : vector<8x256xf32>
    %298 = tpu.matmul %297, %161, %cst_63 {dimension_numbers = #tpu.dot_dimension_numbers<[1], [0], [0], [1], [0, 0, 1, 1], [], []>} : vector<8x8xf32>, vector<8x256xf32>, vector<8x256xf32> -> vector<8x256xf32>
    %299 = vector.broadcast %281 : vector<1x8xf32> to vector<8x8xf32>
    %300 = arith.mulf %12, %299 : vector<8x8xf32>
    %cst_64 = arith.constant dense<0.000000e+00> : vector<8x256xf32>
    %301 = tpu.matmul %300, %243, %cst_64 {dimension_numbers = #tpu.dot_dimension_numbers<[1], [0], [0], [1], [0, 0, 1, 1], [], []>} : vector<8x8xf32>, vector<8x256xf32>, vector<8x256xf32> -> vector<8x256xf32>
    %302 = arith.addf %298, %301 : vector<8x256xf32>
    %303 = vector.broadcast %295 : vector<8x1xf32> to vector<8x256xf32>
    %304 = arith.addf %302, %303 : vector<8x256xf32>
    %c0_65 = arith.constant 0 : index
    %c0_66 = arith.constant 0 : index
    %c0_67 = arith.constant 0 : index
    %305 = vector.load %arg8[%c0_65, %c0_66, %c0_67] : memref<2x8x256xf32, #tpu.memory_space<vmem>>, vector<1x8x256xf32>
    %306 = vector.shape_cast %305 : vector<1x8x256xf32> to vector<8x256xf32>
    %307 = vector.shape_cast %304 : vector<8x256xf32> to vector<1x8x256xf32>
    tpu.vector_store %arg8[%c0_65, %c0_66, %c0_67], %307 {strides = array<i32>} : memref<2x8x256xf32, #tpu.memory_space<vmem>>, vector<1x8x256xf32>,
    %c1 = arith.constant 1 : index
    %c0_68 = arith.constant 0 : index
    %c0_69 = arith.constant 0 : index
    %308 = vector.load %arg1[%c1, %c0_68, %c0_69] : memref<2x8x256xf32, #tpu.memory_space<vmem>>, vector<1x8x256xf32>
    %309 = vector.shape_cast %308 : vector<1x8x256xf32> to vector<8x256xf32>
    %c1_70 = arith.constant 1 : index
    %c0_71 = arith.constant 0 : index
    %c0_72 = arith.constant 0 : index
    %310 = vector.load %arg2[%c1_70, %c0_71, %c0_72] : memref<2x32x1xf32, #tpu.memory_space<vmem>>, vector<1x32x1xf32>
    %311 = vector.shape_cast %310 : vector<1x32x1xf32> to vector<32x1xf32>
    %c1_73 = arith.constant 1 : index
    %c0_74 = arith.constant 0 : index
    %c0_75 = arith.constant 0 : index
    %312 = vector.load %arg3[%c1_73, %c0_74, %c0_75] : memref<2x8x8xf32, #tpu.memory_space<vmem>>, vector<1x8x8xf32>
    %313 = vector.shape_cast %312 : vector<1x8x8xf32> to vector<8x8xf32>
    %314 = vector.shape_cast %309 : vector<8x256xf32> to vector<1x8x256xf32>
    %cst_76 = arith.constant dense<0.000000e+00> : vector<1xf32>
    %315 = vector.multi_reduction <add>, %314, %cst_76 [1, 2] : vector<1x8x256xf32> to vector<1xf32>
    %316 = vector.shape_cast %315 : vector<1xf32> to vector<1x1x1xf32>
    %317 = vector.extract %316[0, 0, 0] : f32 from vector<1x1x1xf32>
    %318 = vector.broadcast %317 : f32 to vector<1x1xf32>
    %319 = arith.mulf %309, %309 : vector<8x256xf32>
    %320 = vector.shape_cast %319 : vector<8x256xf32> to vector<1x8x256xf32>
    %cst_77 = arith.constant dense<0.000000e+00> : vector<1xf32>
    %321 = vector.multi_reduction <add>, %320, %cst_77 [1, 2] : vector<1x8x256xf32> to vector<1xf32>
    %322 = vector.shape_cast %321 : vector<1xf32> to vector<1x1x1xf32>
    %323 = vector.extract %322[0, 0, 0] : f32 from vector<1x1x1xf32>
    %324 = vector.broadcast %323 : f32 to vector<1x1xf32>
    %cst_78 = arith.constant 2.048000e+03 : f32
    %325 = vector.broadcast %cst_78 : f32 to vector<1x1xf32>
    %326 = arith.divf %318, %325 : vector<1x1xf32>
    %cst_79 = arith.constant 2.048000e+03 : f32
    %327 = vector.broadcast %cst_79 : f32 to vector<1x1xf32>
    %328 = arith.divf %324, %327 : vector<1x1xf32>
    %329 = arith.mulf %326, %326 : vector<1x1xf32>
    %330 = arith.subf %328, %329 : vector<1x1xf32>
    %cst_80 = arith.constant 0.000000e+00 : f32
    %331 = vector.broadcast %cst_80 : f32 to vector<1x1xf32>
    %332 = arith.maximumf %330, %331 : vector<1x1xf32>
    %cst_81 = arith.constant 9.99999974E-6 : f32
    %333 = vector.broadcast %cst_81 : f32 to vector<1x1xf32>
    %334 = arith.addf %332, %333 : vector<1x1xf32>
    %335 = math.rsqrt %334 : vector<1x1xf32>
    %336 = vector.extract_strided_slice %311 {offsets = [0, 0], sizes = [8, 1], strides = [1, 1]} : vector<32x1xf32> to vector<8x1xf32>
    %cst_82 = arith.constant 1.000000e+00 : f32
    %337 = vector.broadcast %cst_82 : f32 to vector<8x1xf32>
    %338 = arith.addf %337, %336 : vector<8x1xf32>
    %339 = vector.broadcast %335 : vector<1x1xf32> to vector<8x1xf32>
    %340 = arith.mulf %339, %338 : vector<8x1xf32>
    %341 = vector.extract_strided_slice %311 {offsets = [8, 0], sizes = [8, 1], strides = [1, 1]} : vector<32x1xf32> to vector<8x1xf32>
    %342 = vector.broadcast %326 : vector<1x1xf32> to vector<8x1xf32>
    %343 = arith.mulf %342, %340 : vector<8x1xf32>
    %344 = arith.subf %341, %343 : vector<8x1xf32>
    %345 = vector.broadcast %340 : vector<8x1xf32> to vector<8x256xf32>
    %346 = arith.mulf %309, %345 : vector<8x256xf32>
    %347 = vector.broadcast %344 : vector<8x1xf32> to vector<8x256xf32>
    %348 = arith.addf %346, %347 : vector<8x256xf32>
    %cst_83 = arith.constant 0.000000e+00 : f32
    %349 = vector.broadcast %cst_83 : f32 to vector<8x1xf32>
    %350 = tpu.concatenate %349, %348, %349 in 1 : vector<8x1xf32>, vector<8x256xf32>, vector<8x1xf32> -> vector<8x258xf32>
    %351 = vector.extract_strided_slice %350 {offsets = [0, 0], sizes = [8, 256], strides = [1, 1]} : vector<8x258xf32> to vector<8x256xf32>
    %352 = vector.extract_strided_slice %350 {offsets = [0, 1], sizes = [8, 256], strides = [1, 1]} : vector<8x258xf32> to vector<8x256xf32>
    %353 = vector.extract_strided_slice %350 {offsets = [0, 2], sizes = [8, 256], strides = [1, 1]} : vector<8x258xf32> to vector<8x256xf32>
    %354 = tpu.concatenate %351, %352, %353 in 0 : vector<8x256xf32>, vector<8x256xf32>, vector<8x256xf32> -> vector<24x256xf32>
    %cst_84 = arith.constant dense<0.000000e+00> : vector<8x256xf32>
    %355 = tpu.matmul %0, %354, %cst_84 {dimension_numbers = #tpu.dot_dimension_numbers<[1], [0], [0], [1], [0, 0, 1, 1], [], []>} : vector<8x24xf32>, vector<24x256xf32>, vector<8x256xf32> -> vector<8x256xf32>
    %356 = vector.broadcast %4 : vector<8x1xf32> to vector<8x256xf32>
    %357 = arith.addf %355, %356 : vector<8x256xf32>
    %c1_i32_85 = arith.constant 1 : i32
    %358 = tpu.dynamic_rotate %309 by %c1_i32_85 dim 1 : vector<8x256xf32>, i32 -> vector<8x256xf32>
    %c255_i32_86 = arith.constant 255 : i32
    %359 = tpu.dynamic_rotate %309 by %c255_i32_86 dim 1 : vector<8x256xf32>, i32 -> vector<8x256xf32>
    %360 = arith.addf %309, %359 : vector<8x256xf32>
    %361 = arith.addf %358, %309 : vector<8x256xf32>
    %c0_i32_87 = arith.constant 0 : i32
    %362 = vector.broadcast %c0_i32_87 : i32 to vector<8x256xi32>
    %363 = arith.cmpi eq, %29, %362 : vector<8x256xi32>
    %364 = arith.select %363, %360, %361 : vector<8x256xi1>, vector<8x256xf32>
    %cst_88 = arith.constant 5.000000e-01 : f32
    %365 = vector.broadcast %cst_88 : f32 to vector<8x256xf32>
    %366 = arith.mulf %364, %365 : vector<8x256xf32>
    %cst_89 = arith.constant 2.048000e+03 : f32
    %367 = vector.broadcast %cst_89 : f32 to vector<1x1xf32>
    %368 = arith.divf %318, %367 : vector<1x1xf32>
    %369 = arith.mulf %366, %366 : vector<8x256xf32>
    %370 = vector.shape_cast %369 : vector<8x256xf32> to vector<1x8x256xf32>
    %cst_90 = arith.constant dense<0.000000e+00> : vector<1xf32>
    %371 = vector.multi_reduction <add>, %370, %cst_90 [1, 2] : vector<1x8x256xf32> to vector<1xf32>
    %372 = vector.shape_cast %371 : vector<1xf32> to vector<1x1x1xf32>
    %373 = vector.extract %372[0, 0, 0] : f32 from vector<1x1x1xf32>
    %374 = vector.broadcast %373 : f32 to vector<1x1xf32>
    %cst_91 = arith.constant 2.048000e+03 : f32
    %375 = vector.broadcast %cst_91 : f32 to vector<1x1xf32>
    %376 = arith.divf %374, %375 : vector<1x1xf32>
    %377 = arith.mulf %368, %368 : vector<1x1xf32>
    %378 = arith.subf %376, %377 : vector<1x1xf32>
    %cst_92 = arith.constant 0.000000e+00 : f32
    %379 = vector.broadcast %cst_92 : f32 to vector<1x1xf32>
    %380 = arith.maximumf %378, %379 : vector<1x1xf32>
    %cst_93 = arith.constant 9.99999974E-6 : f32
    %381 = vector.broadcast %cst_93 : f32 to vector<1x1xf32>
    %382 = arith.addf %380, %381 : vector<1x1xf32>
    %383 = math.rsqrt %382 : vector<1x1xf32>
    %384 = vector.extract_strided_slice %311 {offsets = [16, 0], sizes = [8, 1], strides = [1, 1]} : vector<32x1xf32> to vector<8x1xf32>
    %cst_94 = arith.constant 1.000000e+00 : f32
    %385 = vector.broadcast %cst_94 : f32 to vector<8x1xf32>
    %386 = arith.addf %385, %384 : vector<8x1xf32>
    %387 = vector.broadcast %383 : vector<1x1xf32> to vector<8x1xf32>
    %388 = arith.mulf %387, %386 : vector<8x1xf32>
    %389 = vector.extract_strided_slice %311 {offsets = [24, 0], sizes = [8, 1], strides = [1, 1]} : vector<32x1xf32> to vector<8x1xf32>
    %390 = vector.broadcast %368 : vector<1x1xf32> to vector<8x1xf32>
    %391 = arith.mulf %390, %388 : vector<8x1xf32>
    %392 = arith.subf %389, %391 : vector<8x1xf32>
    %393 = vector.broadcast %388 : vector<8x1xf32> to vector<8x256xf32>
    %394 = arith.mulf %366, %393 : vector<8x256xf32>
    %395 = vector.broadcast %392 : vector<8x1xf32> to vector<8x256xf32>
    %396 = arith.addf %394, %395 : vector<8x256xf32>
    %397 = vector.extract_strided_slice %3 {offsets = [0, 0], sizes = [1, 256], strides = [1, 1]} : vector<9x256xf32> to vector<1x256xf32>
    %c8_i32_95 = arith.constant 8 : i32
    %398 = tpu.dynamic_rotate %396 by %c8_i32_95 dim 1 : vector<8x256xf32>, i32 -> vector<8x256xf32>
    %399 = vector.broadcast %397 : vector<1x256xf32> to vector<8x256xf32>
    %400 = arith.mulf %399, %398 : vector<8x256xf32>
    %c6_i32_96 = arith.constant 6 : i32
    %401 = tpu.dynamic_rotate %396 by %c6_i32_96 dim 1 : vector<8x256xf32>, i32 -> vector<8x256xf32>
    %402 = vector.extract_strided_slice %3 {offsets = [1, 0], sizes = [1, 256], strides = [1, 1]} : vector<9x256xf32> to vector<1x256xf32>
    %403 = vector.broadcast %402 : vector<1x256xf32> to vector<8x256xf32>
    %404 = arith.mulf %403, %401 : vector<8x256xf32>
    %405 = arith.addf %400, %404 : vector<8x256xf32>
    %c4_i32_97 = arith.constant 4 : i32
    %406 = tpu.dynamic_rotate %396 by %c4_i32_97 dim 1 : vector<8x256xf32>, i32 -> vector<8x256xf32>
    %407 = vector.extract_strided_slice %3 {offsets = [2, 0], sizes = [1, 256], strides = [1, 1]} : vector<9x256xf32> to vector<1x256xf32>
    %408 = vector.broadcast %407 : vector<1x256xf32> to vector<8x256xf32>
    %409 = arith.mulf %408, %406 : vector<8x256xf32>
    %410 = arith.addf %405, %409 : vector<8x256xf32>
    %c2_i32_98 = arith.constant 2 : i32
    %411 = tpu.dynamic_rotate %396 by %c2_i32_98 dim 1 : vector<8x256xf32>, i32 -> vector<8x256xf32>
    %412 = vector.extract_strided_slice %3 {offsets = [3, 0], sizes = [1, 256], strides = [1, 1]} : vector<9x256xf32> to vector<1x256xf32>
    %413 = vector.broadcast %412 : vector<1x256xf32> to vector<8x256xf32>
    %414 = arith.mulf %413, %411 : vector<8x256xf32>
    %415 = arith.addf %410, %414 : vector<8x256xf32>
    %416 = vector.extract_strided_slice %3 {offsets = [4, 0], sizes = [1, 256], strides = [1, 1]} : vector<9x256xf32> to vector<1x256xf32>
    %417 = vector.broadcast %416 : vector<1x256xf32> to vector<8x256xf32>
    %418 = arith.mulf %417, %396 : vector<8x256xf32>
    %419 = arith.addf %415, %418 : vector<8x256xf32>
    %c254_i32_99 = arith.constant 254 : i32
    %420 = tpu.dynamic_rotate %396 by %c254_i32_99 dim 1 : vector<8x256xf32>, i32 -> vector<8x256xf32>
    %421 = vector.extract_strided_slice %3 {offsets = [5, 0], sizes = [1, 256], strides = [1, 1]} : vector<9x256xf32> to vector<1x256xf32>
    %422 = vector.broadcast %421 : vector<1x256xf32> to vector<8x256xf32>
    %423 = arith.mulf %422, %420 : vector<8x256xf32>
    %424 = arith.addf %419, %423 : vector<8x256xf32>
    %c252_i32_100 = arith.constant 252 : i32
    %425 = tpu.dynamic_rotate %396 by %c252_i32_100 dim 1 : vector<8x256xf32>, i32 -> vector<8x256xf32>
    %426 = vector.extract_strided_slice %3 {offsets = [6, 0], sizes = [1, 256], strides = [1, 1]} : vector<9x256xf32> to vector<1x256xf32>
    %427 = vector.broadcast %426 : vector<1x256xf32> to vector<8x256xf32>
    %428 = arith.mulf %427, %425 : vector<8x256xf32>
    %429 = arith.addf %424, %428 : vector<8x256xf32>
    %c250_i32_101 = arith.constant 250 : i32
    %430 = tpu.dynamic_rotate %396 by %c250_i32_101 dim 1 : vector<8x256xf32>, i32 -> vector<8x256xf32>
    %431 = vector.extract_strided_slice %3 {offsets = [7, 0], sizes = [1, 256], strides = [1, 1]} : vector<9x256xf32> to vector<1x256xf32>
    %432 = vector.broadcast %431 : vector<1x256xf32> to vector<8x256xf32>
    %433 = arith.mulf %432, %430 : vector<8x256xf32>
    %434 = arith.addf %429, %433 : vector<8x256xf32>
    %c248_i32_102 = arith.constant 248 : i32
    %435 = tpu.dynamic_rotate %396 by %c248_i32_102 dim 1 : vector<8x256xf32>, i32 -> vector<8x256xf32>
    %436 = vector.extract_strided_slice %3 {offsets = [8, 0], sizes = [1, 256], strides = [1, 1]} : vector<9x256xf32> to vector<1x256xf32>
    %437 = vector.broadcast %436 : vector<1x256xf32> to vector<8x256xf32>
    %438 = arith.mulf %437, %435 : vector<8x256xf32>
    %439 = arith.addf %434, %438 : vector<8x256xf32>
    %440 = vector.shape_cast %439 : vector<8x256xf32> to vector<1x8x256xf32>
    %cst_103 = arith.constant dense<0.000000e+00> : vector<1xf32>
    %441 = vector.multi_reduction <add>, %440, %cst_103 [1, 2] : vector<1x8x256xf32> to vector<1xf32>
    %442 = vector.shape_cast %441 : vector<1xf32> to vector<1x1x1xf32>
    %443 = vector.extract %442[0, 0, 0] : f32 from vector<1x1x1xf32>
    %444 = vector.broadcast %443 : f32 to vector<1x1xf32>
    %445 = arith.mulf %439, %439 : vector<8x256xf32>
    %446 = vector.shape_cast %445 : vector<8x256xf32> to vector<1x8x256xf32>
    %cst_104 = arith.constant dense<0.000000e+00> : vector<1xf32>
    %447 = vector.multi_reduction <add>, %446, %cst_104 [1, 2] : vector<1x8x256xf32> to vector<1xf32>
    %448 = vector.shape_cast %447 : vector<1xf32> to vector<1x1x1xf32>
    %449 = vector.extract %448[0, 0, 0] : f32 from vector<1x1x1xf32>
    %450 = vector.broadcast %449 : f32 to vector<1x1xf32>
    %451 = vector.shape_cast %357 : vector<8x256xf32> to vector<1x8x256xf32>
    %cst_105 = arith.constant dense<0.000000e+00> : vector<1xf32>
    %452 = vector.multi_reduction <add>, %451, %cst_105 [1, 2] : vector<1x8x256xf32> to vector<1xf32>
    %453 = vector.shape_cast %452 : vector<1xf32> to vector<1x1x1xf32>
    %454 = vector.extract %453[0, 0, 0] : f32 from vector<1x1x1xf32>
    %455 = vector.broadcast %454 : f32 to vector<1x1xf32>
    %456 = arith.mulf %357, %357 : vector<8x256xf32>
    %457 = vector.shape_cast %456 : vector<8x256xf32> to vector<1x8x256xf32>
    %cst_106 = arith.constant dense<0.000000e+00> : vector<1xf32>
    %458 = vector.multi_reduction <add>, %457, %cst_106 [1, 2] : vector<1x8x256xf32> to vector<1xf32>
    %459 = vector.shape_cast %458 : vector<1xf32> to vector<1x1x1xf32>
    %460 = vector.extract %459[0, 0, 0] : f32 from vector<1x1x1xf32>
    %461 = vector.broadcast %460 : f32 to vector<1x1xf32>
    %462 = arith.addf %444, %455 : vector<1x1xf32>
    %cst_107 = arith.constant 4.096000e+03 : f32
    %463 = vector.broadcast %cst_107 : f32 to vector<1x1xf32>
    %464 = arith.divf %462, %463 : vector<1x1xf32>
    %465 = arith.addf %450, %461 : vector<1x1xf32>
    %cst_108 = arith.constant 4.096000e+03 : f32
    %466 = vector.broadcast %cst_108 : f32 to vector<1x1xf32>
    %467 = arith.divf %465, %466 : vector<1x1xf32>
    %468 = arith.mulf %464, %464 : vector<1x1xf32>
    %469 = arith.subf %467, %468 : vector<1x1xf32>
    %cst_109 = arith.constant 0.000000e+00 : f32
    %470 = vector.broadcast %cst_109 : f32 to vector<1x1xf32>
    %471 = arith.maximumf %469, %470 : vector<1x1xf32>
    %cst_110 = arith.constant 9.99999974E-6 : f32
    %472 = vector.broadcast %cst_110 : f32 to vector<1x1xf32>
    %473 = arith.addf %471, %472 : vector<1x1xf32>
    %474 = math.rsqrt %473 : vector<1x1xf32>
    %475 = vector.extract_strided_slice %313 {offsets = [0, 0], sizes = [1, 8], strides = [1, 1]} : vector<8x8xf32> to vector<1x8xf32>
    %cst_111 = arith.constant 1.000000e+00 : f32
    %476 = vector.broadcast %cst_111 : f32 to vector<1x8xf32>
    %477 = arith.addf %476, %475 : vector<1x8xf32>
    %478 = vector.broadcast %474 : vector<1x1xf32> to vector<1x8xf32>
    %479 = arith.mulf %478, %477 : vector<1x8xf32>
    %480 = vector.extract_strided_slice %313 {offsets = [2, 0], sizes = [1, 8], strides = [1, 1]} : vector<8x8xf32> to vector<1x8xf32>
    %481 = vector.broadcast %464 : vector<1x1xf32> to vector<1x8xf32>
    %482 = arith.mulf %481, %479 : vector<1x8xf32>
    %483 = arith.subf %480, %482 : vector<1x8xf32>
    %484 = vector.extract_strided_slice %313 {offsets = [1, 0], sizes = [1, 8], strides = [1, 1]} : vector<8x8xf32> to vector<1x8xf32>
    %cst_112 = arith.constant 1.000000e+00 : f32
    %485 = vector.broadcast %cst_112 : f32 to vector<1x8xf32>
    %486 = arith.addf %485, %484 : vector<1x8xf32>
    %487 = vector.broadcast %474 : vector<1x1xf32> to vector<1x8xf32>
    %488 = arith.mulf %487, %486 : vector<1x8xf32>
    %489 = vector.extract_strided_slice %313 {offsets = [3, 0], sizes = [1, 8], strides = [1, 1]} : vector<8x8xf32> to vector<1x8xf32>
    %490 = vector.broadcast %464 : vector<1x1xf32> to vector<1x8xf32>
    %491 = arith.mulf %490, %488 : vector<1x8xf32>
    %492 = arith.subf %489, %491 : vector<1x8xf32>
    %493 = vector.broadcast %483 : vector<1x8xf32> to vector<8x8xf32>
    %494 = arith.mulf %8, %493 : vector<8x8xf32>
    %cst_113 = arith.constant dense<0.000000e+00> : vector<8xf32>
    %495 = vector.multi_reduction <add>, %494, %cst_113 [1] : vector<8x8xf32> to vector<8xf32>
    %496 = vector.shape_cast %495 : vector<8xf32> to vector<8x1xf32>
    %497 = vector.broadcast %492 : vector<1x8xf32> to vector<8x8xf32>
    %498 = arith.mulf %9, %497 : vector<8x8xf32>
    %cst_114 = arith.constant dense<0.000000e+00> : vector<8xf32>
    %499 = vector.multi_reduction <add>, %498, %cst_114 [1] : vector<8x8xf32> to vector<8xf32>
    %500 = vector.shape_cast %499 : vector<8xf32> to vector<8x1xf32>
    %501 = arith.addf %496, %500 : vector<8x1xf32>
    %502 = arith.addf %501, %5 : vector<8x1xf32>
    %503 = vector.broadcast %479 : vector<1x8xf32> to vector<8x8xf32>
    %504 = arith.mulf %8, %503 : vector<8x8xf32>
    %cst_115 = arith.constant dense<0.000000e+00> : vector<8x256xf32>
    %505 = tpu.matmul %504, %439, %cst_115 {dimension_numbers = #tpu.dot_dimension_numbers<[1], [0], [0], [1], [0, 0, 1, 1], [], []>} : vector<8x8xf32>, vector<8x256xf32>, vector<8x256xf32> -> vector<8x256xf32>
    %506 = vector.broadcast %488 : vector<1x8xf32> to vector<8x8xf32>
    %507 = arith.mulf %9, %506 : vector<8x8xf32>
    %cst_116 = arith.constant dense<0.000000e+00> : vector<8x256xf32>
    %508 = tpu.matmul %507, %357, %cst_116 {dimension_numbers = #tpu.dot_dimension_numbers<[1], [0], [0], [1], [0, 0, 1, 1], [], []>} : vector<8x8xf32>, vector<8x256xf32>, vector<8x256xf32> -> vector<8x256xf32>
    %509 = arith.addf %505, %508 : vector<8x256xf32>
    %510 = vector.broadcast %502 : vector<8x1xf32> to vector<8x256xf32>
    %511 = arith.addf %509, %510 : vector<8x256xf32>
    %512 = arith.negf %511 : vector<8x256xf32>
    %513 = math.exp %512 : vector<8x256xf32>
    %cst_117 = arith.constant 1.000000e+00 : f32
    %514 = vector.broadcast %cst_117 : f32 to vector<8x256xf32>
    %515 = arith.addf %514, %513 : vector<8x256xf32>
    %516 = arith.divf %514, %515 : vector<8x256xf32>
    %517 = arith.mulf %511, %516 : vector<8x256xf32>
    %cst_118 = arith.constant dense<0.000000e+00> : vector<8x256xf32>
    %518 = tpu.matmul %10, %517, %cst_118 {dimension_numbers = #tpu.dot_dimension_numbers<[1], [0], [0], [1], [0, 0, 1, 1], [], []>} : vector<8x8xf32>, vector<8x256xf32>, vector<8x256xf32> -> vector<8x256xf32>
    %519 = vector.broadcast %6 : vector<8x1xf32> to vector<8x256xf32>
    %520 = arith.addf %518, %519 : vector<8x256xf32>
    %521 = arith.mulf %357, %520 : vector<8x256xf32>
    %522 = vector.shape_cast %521 : vector<8x256xf32> to vector<1x8x256xf32>
    %cst_119 = arith.constant dense<0.000000e+00> : vector<1xf32>
    %523 = vector.multi_reduction <add>, %522, %cst_119 [1, 2] : vector<1x8x256xf32> to vector<1xf32>
    %524 = vector.shape_cast %523 : vector<1xf32> to vector<1x1x1xf32>
    %525 = vector.extract %524[0, 0, 0] : f32 from vector<1x1x1xf32>
    %526 = vector.broadcast %525 : f32 to vector<1x1xf32>
    %527 = arith.mulf %521, %521 : vector<8x256xf32>
    %528 = vector.shape_cast %527 : vector<8x256xf32> to vector<1x8x256xf32>
    %cst_120 = arith.constant dense<0.000000e+00> : vector<1xf32>
    %529 = vector.multi_reduction <add>, %528, %cst_120 [1, 2] : vector<1x8x256xf32> to vector<1xf32>
    %530 = vector.shape_cast %529 : vector<1xf32> to vector<1x1x1xf32>
    %531 = vector.extract %530[0, 0, 0] : f32 from vector<1x1x1xf32>
    %532 = vector.broadcast %531 : f32 to vector<1x1xf32>
    %533 = arith.addf %444, %526 : vector<1x1xf32>
    %cst_121 = arith.constant 4.096000e+03 : f32
    %534 = vector.broadcast %cst_121 : f32 to vector<1x1xf32>
    %535 = arith.divf %533, %534 : vector<1x1xf32>
    %536 = arith.addf %450, %532 : vector<1x1xf32>
    %cst_122 = arith.constant 4.096000e+03 : f32
    %537 = vector.broadcast %cst_122 : f32 to vector<1x1xf32>
    %538 = arith.divf %536, %537 : vector<1x1xf32>
    %539 = arith.mulf %535, %535 : vector<1x1xf32>
    %540 = arith.subf %538, %539 : vector<1x1xf32>
    %cst_123 = arith.constant 0.000000e+00 : f32
    %541 = vector.broadcast %cst_123 : f32 to vector<1x1xf32>
    %542 = arith.maximumf %540, %541 : vector<1x1xf32>
    %cst_124 = arith.constant 9.99999974E-6 : f32
    %543 = vector.broadcast %cst_124 : f32 to vector<1x1xf32>
    %544 = arith.addf %542, %543 : vector<1x1xf32>
    %545 = math.rsqrt %544 : vector<1x1xf32>
    %546 = vector.extract_strided_slice %313 {offsets = [4, 0], sizes = [1, 8], strides = [1, 1]} : vector<8x8xf32> to vector<1x8xf32>
    %cst_125 = arith.constant 1.000000e+00 : f32
    %547 = vector.broadcast %cst_125 : f32 to vector<1x8xf32>
    %548 = arith.addf %547, %546 : vector<1x8xf32>
    %549 = vector.broadcast %545 : vector<1x1xf32> to vector<1x8xf32>
    %550 = arith.mulf %549, %548 : vector<1x8xf32>
    %551 = vector.extract_strided_slice %313 {offsets = [6, 0], sizes = [1, 8], strides = [1, 1]} : vector<8x8xf32> to vector<1x8xf32>
    %552 = vector.broadcast %535 : vector<1x1xf32> to vector<1x8xf32>
    %553 = arith.mulf %552, %550 : vector<1x8xf32>
    %554 = arith.subf %551, %553 : vector<1x8xf32>
    %555 = vector.extract_strided_slice %313 {offsets = [5, 0], sizes = [1, 8], strides = [1, 1]} : vector<8x8xf32> to vector<1x8xf32>
    %cst_126 = arith.constant 1.000000e+00 : f32
    %556 = vector.broadcast %cst_126 : f32 to vector<1x8xf32>
    %557 = arith.addf %556, %555 : vector<1x8xf32>
    %558 = vector.broadcast %545 : vector<1x1xf32> to vector<1x8xf32>
    %559 = arith.mulf %558, %557 : vector<1x8xf32>
    %560 = vector.extract_strided_slice %313 {offsets = [7, 0], sizes = [1, 8], strides = [1, 1]} : vector<8x8xf32> to vector<1x8xf32>
    %561 = vector.broadcast %535 : vector<1x1xf32> to vector<1x8xf32>
    %562 = arith.mulf %561, %559 : vector<1x8xf32>
    %563 = arith.subf %560, %562 : vector<1x8xf32>
    %564 = vector.broadcast %554 : vector<1x8xf32> to vector<8x8xf32>
    %565 = arith.mulf %11, %564 : vector<8x8xf32>
    %cst_127 = arith.constant dense<0.000000e+00> : vector<8xf32>
    %566 = vector.multi_reduction <add>, %565, %cst_127 [1] : vector<8x8xf32> to vector<8xf32>
    %567 = vector.shape_cast %566 : vector<8xf32> to vector<8x1xf32>
    %568 = vector.broadcast %563 : vector<1x8xf32> to vector<8x8xf32>
    %569 = arith.mulf %12, %568 : vector<8x8xf32>
    %cst_128 = arith.constant dense<0.000000e+00> : vector<8xf32>
    %570 = vector.multi_reduction <add>, %569, %cst_128 [1] : vector<8x8xf32> to vector<8xf32>
    %571 = vector.shape_cast %570 : vector<8xf32> to vector<8x1xf32>
    %572 = arith.addf %567, %571 : vector<8x1xf32>
    %573 = arith.addf %572, %7 : vector<8x1xf32>
    %574 = vector.broadcast %550 : vector<1x8xf32> to vector<8x8xf32>
    %575 = arith.mulf %11, %574 : vector<8x8xf32>
    %cst_129 = arith.constant dense<0.000000e+00> : vector<8x256xf32>
    %576 = tpu.matmul %575, %439, %cst_129 {dimension_numbers = #tpu.dot_dimension_numbers<[1], [0], [0], [1], [0, 0, 1, 1], [], []>} : vector<8x8xf32>, vector<8x256xf32>, vector<8x256xf32> -> vector<8x256xf32>
    %577 = vector.broadcast %559 : vector<1x8xf32> to vector<8x8xf32>
    %578 = arith.mulf %12, %577 : vector<8x8xf32>
    %cst_130 = arith.constant dense<0.000000e+00> : vector<8x256xf32>
    %579 = tpu.matmul %578, %521, %cst_130 {dimension_numbers = #tpu.dot_dimension_numbers<[1], [0], [0], [1], [0, 0, 1, 1], [], []>} : vector<8x8xf32>, vector<8x256xf32>, vector<8x256xf32> -> vector<8x256xf32>
    %580 = arith.addf %576, %579 : vector<8x256xf32>
    %581 = vector.broadcast %573 : vector<8x1xf32> to vector<8x256xf32>
    %582 = arith.addf %580, %581 : vector<8x256xf32>
    %c1_131 = arith.constant 1 : index
    %c0_132 = arith.constant 0 : index
    %c0_133 = arith.constant 0 : index
    %583 = vector.load %arg8[%c1_131, %c0_132, %c0_133] : memref<2x8x256xf32, #tpu.memory_space<vmem>>, vector<1x8x256xf32>
    %584 = vector.shape_cast %583 : vector<1x8x256xf32> to vector<8x256xf32>
    %585 = vector.shape_cast %582 : vector<8x256xf32> to vector<1x8x256xf32>
    tpu.vector_store %arg8[%c1_131, %c0_132, %c0_133], %585 {strides = array<i32>} : memref<2x8x256xf32, #tpu.memory_space<vmem>>, vector<1x8x256xf32>,
    return
  }
  func.func @transform_0(%arg0: i32) -> (i32, i32, i32) {
    %c0_i32 = arith.constant 0 : i32
    %c0_i32_0 = arith.constant 0 : i32
    %c0_i32_1 = arith.constant 0 : i32
    return %arg0, %c0_i32, %c0_i32_0 : i32, i32, i32
  }
  func.func @transform_1(%arg0: i32) -> (i32, i32, i32) {
    %c0_i32 = arith.constant 0 : i32
    %c0_i32_0 = arith.constant 0 : i32
    %c0_i32_1 = arith.constant 0 : i32
    return %arg0, %c0_i32, %c0_i32_0 : i32, i32, i32
  }
  func.func @transform_2(%arg0: i32) -> (i32, i32, i32) {
    %c0_i32 = arith.constant 0 : i32
    %c0_i32_0 = arith.constant 0 : i32
    %c0_i32_1 = arith.constant 0 : i32
    return %arg0, %c0_i32, %c0_i32_0 : i32, i32, i32
  }
  func.func @transform_3(%arg0: i32) -> (i32, i32) {
    %c0_i32 = arith.constant 0 : i32
    %c0_i32_0 = arith.constant 0 : i32
    %c0_i32_1 = arith.constant 0 : i32
    return %c0_i32, %c0_i32_0 : i32, i32
  }
  func.func @transform_4(%arg0: i32) -> (i32, i32) {
    %c0_i32 = arith.constant 0 : i32
    %c0_i32_0 = arith.constant 0 : i32
    %c0_i32_1 = arith.constant 0 : i32
    return %c0_i32, %c0_i32_0 : i32, i32
  }
  func.func @transform_5(%arg0: i32) -> (i32, i32) {
    %c0_i32 = arith.constant 0 : i32
    %c0_i32_0 = arith.constant 0 : i32
    %c0_i32_1 = arith.constant 0 : i32
    return %c0_i32, %c0_i32_0 : i32, i32
  }
  func.func @transform_6(%arg0: i32) -> (i32, i32) {
    %c0_i32 = arith.constant 0 : i32
    %c0_i32_0 = arith.constant 0 : i32
    %c0_i32_1 = arith.constant 0 : i32
    return %c0_i32, %c0_i32_0 : i32, i32
  }
  func.func @transform_7(%arg0: i32) -> (i32, i32, i32) {
    %c0_i32 = arith.constant 0 : i32
    %c0_i32_0 = arith.constant 0 : i32
    %c0_i32_1 = arith.constant 0 : i32
    return %arg0, %c0_i32, %c0_i32_0 : i32, i32, i32
  }
}

</mosaic_0001>

<llo_original>
// kernel: tpu_custom_call.1
$region0: #{tpu_custom_call.1}
  #allocation0 [shape = 'u32[]', space=smem, size = 0x4, offset = 0x4, fixed_abs, tag = 'smem constant byte address 0x4 - core index']
  #allocation1 [shape = 'u32[144,128]{1,0:T(1,128)}', space=vmem, size = 0x12000, scoped, tag = 'internal scratch']
  %s0 = inlined_call_operand.vmem [shape: f32[2,8,256], index: 0, kind: input, shape index: {}]
  %s1 = inlined_call_operand.vmem [shape: f32[2,32,1], index: 1, kind: input, shape index: {}]
  %s2 = inlined_call_operand.vmem [shape: f32[2,8,8], index: 2, kind: input, shape index: {}]
  %s3 = inlined_call_operand.vmem [shape: f32[8,24], index: 3, kind: input, shape index: {}]
  %s4 = inlined_call_operand.vmem [shape: f32[40,8], index: 4, kind: input, shape index: {}]
  %s5 = inlined_call_operand.vmem [shape: f32[32,1], index: 5, kind: input, shape index: {}]
  %s6 = inlined_call_operand.vmem [shape: f32[9,256], index: 6, kind: input, shape index: {}]
  %s7 = inlined_call_operand.hbm [shape: f32[2,8,256], index: 7, kind: output, shape index: {}]
  %s8 = sld [smem:[#allocation0]]
  $region38: #{tpu_custom_call.1} parent=0
    _
  %s10 = ssub.s32 1, %s8
  %s11 = scalar_select 0, %s10, %s8
  $region1: #{tpu_custom_call.1} parent=0
    #allocation2 [shape = 'u8[16384]{0}', space=vmem, size = 0x4000, scoped, tag = 'output window, operand 0, single buffered']
    #allocation3 [shape = 's32[1]{0}', space=sflag, size = 0x4, scoped, tag = 'scoped memory for tpu_custom_call.1']
    %12 = vsyncpa [#allocation3], 0
    // Predicated region
    $region2: #{tpu_custom_call.1} parent=1 // pred_check
      _
    $region3: #{tpu_custom_call.1} parent=1 // pred_check_branch
      %14 = sbr.rel (0) target = $region5
    $region4: #{tpu_custom_call.1} parent=1 // pred_region
      _
    $region5: #{tpu_custom_call.1} parent=1 // pred_fallthru
      _
    // Predicated region
    $region6: #{tpu_custom_call.1} parent=1 // pred_check
      _
    $region7: #{tpu_custom_call.1} parent=1 // pred_check_branch
      %16 = sbr.rel (0) target = $region9
    $region8: #{tpu_custom_call.1} parent=1 // pred_region
      _
    $region9: #{tpu_custom_call.1} parent=1 // pred_fallthru
      _
    // Predicated region
    $region10: #{tpu_custom_call.1} parent=1 // pred_check
      _
    $region11: #{tpu_custom_call.1} parent=1 // pred_check_branch
      %18 = sbr.rel (0) target = $region13
    $region12: #{tpu_custom_call.1} parent=1 // pred_region
      _
    $region13: #{tpu_custom_call.1} parent=1 // pred_fallthru
      _
    // Predicated region
    $region14: #{tpu_custom_call.1} parent=1 // pred_check
      _
    $region15: #{tpu_custom_call.1} parent=1 // pred_check_branch
      %20 = sbr.rel (0) target = $region17
    $region16: #{tpu_custom_call.1} parent=1 // pred_region
      _
    $region17: #{tpu_custom_call.1} parent=1 // pred_fallthru
      _
    // Predicated region
    $region18: #{tpu_custom_call.1} parent=1 // pred_check
      _
    $region19: #{tpu_custom_call.1} parent=1 // pred_check_branch
      %22 = sbr.rel (0) target = $region21
    $region20: #{tpu_custom_call.1} parent=1 // pred_region
      _
    $region21: #{tpu_custom_call.1} parent=1 // pred_fallthru
      _
    // Predicated region
    $region22: #{tpu_custom_call.1} parent=1 // pred_check
      _
    $region23: #{tpu_custom_call.1} parent=1 // pred_check_branch
      %24 = sbr.rel (0) target = $region25
    $region24: #{tpu_custom_call.1} parent=1 // pred_region
      _
    $region25: #{tpu_custom_call.1} parent=1 // pred_fallthru
      _
    // Predicated region
    $region26: #{tpu_custom_call.1} parent=1 // pred_check
      _
    $region27: #{tpu_custom_call.1} parent=1 // pred_check_branch
      %26 = sbr.rel (0) target = $region29
    $region28: #{tpu_custom_call.1} parent=1 // pred_region
      _
    $region29: #{tpu_custom_call.1} parent=1 // pred_fallthru
      _
    %v27 = vld [vmem:[%s3] sm:$0xff]
    %v28 = vld [vmem:[%s4] sm:$0xff]
    %v29 = vld [vmem:[%s4 + $0x8] sm:$0xff]
    %v30 = vld [vmem:[%s4 + $0x10] sm:$0xff]
    %v31 = vld [vmem:[%s4 + $0x18] sm:$0xff]
    %v32 = vld [vmem:[%s4 + $0x20] sm:$0xff]
    %v33 = vld [vmem:[%s5] sm:$0xff]
    %v34 = vld [vmem:[%s5 + $0x8] sm:$0xff]
    %v35 = vld [vmem:[%s5 + $0x10] sm:$0xff]
    %v36 = vld [vmem:[%s5 + $0x18] sm:$0xff]
    %v37 = vld [vmem:[%s6] sm:$0xff]
    %v38 = vld [vmem:[%s6 + $0x8] sm:$0xff]
    %v39 = vld [vmem:[%s6 + $0x10] sm:$0x1]
    %v40 = vld [vmem:[%s6 + $0x18] sm:$0x1]
    %v41 = vlaneseq
    %v42 = vand.u32 %v41, 127
    %v43 = vadd.s32 %v42, 128
    %vm44 = vcmp.lt.s32.totalorder %v42, 0
    %v45 = vsub.s32 0, %v42
    %v46 = vsel %vm44, %v45, %v42
    %v47 = vshrl.u32 %v46, 1
    %v48 = vand.u32 %v46, 1
    %v49 = vsub.s32 0, %v48
    %v50 = vsel %vm44, %v49, %v48
    %vm51 = vcmp.lt.s32.totalorder %v43, 0
    %v52 = vsub.s32 0, %v43
    %v53 = vsel %vm51, %v52, %v43
    %v54 = vshrl.u32 %v53, 1
    %v55 = vand.u32 %v53, 1
    %v56 = vsub.s32 0, %v55
    %v57 = vsel %vm51, %v56, %v55
    %vm58 = vcmp.ne.s32.totalorder %v50, 0
    %vm59 = vcmp.ne.s32.totalorder %v57, 0
    %vm60 = vcmp.lt.s32.totalorder %v50, 0
    %vm61 = vcmp.lt.s32.totalorder %v57, 0
    %vm62 = vmand %vm60, %vm58
    %vm63 = vmand %vm61, %vm59
    %v64 = vadd.s32 %v50, 2
    %v65 = vadd.s32 %v57, 2
    %v66 = vsel %vm62, %v64, %v50
    %v67 = vsel %vm63, %v65, %v57
    %v68 = vld [vmem:[%s0] sm:$0xff]
    %v69 = vld [vmem:[%s0 + $0x8] sm:$0xff]
    %v70 = vld [vmem:[%s1] sm:$0xff]
    %v71 = vld [vmem:[%s1 + $0x8] sm:$0xff]
    %v72 = vld [vmem:[%s1 + $0x10] sm:$0xff]
    %v73 = vld [vmem:[%s1 + $0x18] sm:$0xff]
    %v74 = vld [vmem:[%s2] sm:$0xff]
    %v75 = vadd.f32 %v68, %v69
    %76 = vadd.xlane.f32.xlu0 %v75
    %v77 = vpop.xlane.xlu0 %76
    %v78 = vrot.slane %v77, 4
    %v79 = vadd.f32 %v77, %v78
    %v80 = vrot.slane %v79, 2
    %v81 = vadd.f32 %v79, %v80
    %v82 = vrot.slane %v81, 1
    %v83 = vadd.f32 %v81, %v82
    %s84 = vtos %v83
    %v85 = vstv %s84
    %v86 = vmul.f32 %v68, %v68
    %v87 = vmul.f32 %v69, %v69
    %v88 = vadd.f32 %v86, %v87
    %89 = vadd.xlane.f32.xlu0 %v88
    %v90 = vpop.xlane.xlu0 %89
    %v91 = vrot.slane %v90, 4
    %v92 = vadd.f32 %v90, %v91
    %v93 = vrot.slane %v92, 2
    %v94 = vadd.f32 %v92, %v93
    %v95 = vrot.slane %v94, 1
    %v96 = vadd.f32 %v94, %v95
    %s97 = vtos %v96
    %v98 = vstv %s97
    %v99 = vrcp.pop 2048.0
    %v100 = vmul.f32 %v85, %v99
    %v101 = vmul.f32 %v98, %v99
    %v102 = vmul.f32 %v100, %v100
    %v103 = vsub.f32 %v101, %v102
    %v104 = vmax.f32 %v103, 0.0
    %v105 = vadd.f32 %v104, 1e-05
    %v106 = vrsqrt.pop %v105
    %v107 = vadd.f32 %v70, 1.0
    %v108 = vmul.f32 %v106, %v107
    %v109 = vmul.f32 %v100, %v108
    %v110 = vsub.f32 %v71, %v109
    %112 = vset.pattern.permute.xlu0 0
    %113 = vperm.xlu0 %112, %v108
    %v114 = vpop.permute.xlu0 %113
    %v116 = vmul.f32 %v68, %v114
    %v117 = vmul.f32 %v69, %v114
    %119 = vset.pattern.permute.xlu0 0
    %120 = vperm.xlu0 %119, %v110
    %v121 = vpop.permute.xlu0 %120
    %v123 = vadd.f32 %v116, %v121
    %v124 = vadd.f32 %v117, %v121
    %127 = vrot.lane.b32.xlu0 %v123, 1
    %v128 = vpop.permute.xlu0 %127
    %129 = vrot.lane.b32.xlu0 %v124, 1
    %v130 = vpop.permute.xlu0 %129
    %vm131 = vcmask 7168
    %v132 = vsel %vm131, %v128, %v130
    %v136 = vsel %vm131, 0.0, %v128
    %v137 = vsel %vm131, %v130, 0.0
    %140 = vrot.lane.b32.xlu0 %v136, 127
    %v141 = vpop.permute.xlu0 %140
    %142 = vrot.lane.b32.xlu0 %v132, 127
    %v143 = vpop.permute.xlu0 %142
    %144 = vrot.lane.b32.xlu0 %v137, 127
    %v145 = vpop.permute.xlu0 %144
    %vm146 = vcmask 1039360
    %v147 = vsel %vm146, %v141, %v143
    %v148 = vsel %vm146, %v143, %v145
    %151 = vrot.lane.b32.xlu0 %v136, 126
    %v152 = vpop.permute.xlu0 %151
    %153 = vrot.lane.b32.xlu0 %v132, 126
    %v154 = vpop.permute.xlu0 %153
    %155 = vrot.lane.b32.xlu0 %v137, 126
    %v156 = vpop.permute.xlu0 %155
    %vm157 = vcmask 1031168
    %v158 = vsel %vm157, %v152, %v154
    %v159 = vsel %vm157, %v154, %v156
    %163 = vset.pattern.permute.xlu0 0
    %164 = vperm.xlu0 %163, %v33
    %v165 = vpop.permute.xlu0 %164
    %vm167 = vcmask 195584
    %v169 = vsel %vm167, %v27, 0
    %171 = vmatprep.subr.mxu0 0.0
    %172 = vmatpush1.msra.mxu0 0.0
    %173 = vmatprep.subr.mxu0 0.0
    %174 = vmatpush1.msra.mxu0 0.0
    %175 = vmatprep.subr.mxu0 0.0
    %176 = vmatpush1.msra.mxu0 0.0
    %177 = vmatprep.subr.mxu0 0.0
    %178 = vmatpush1.msra.mxu0 0.0
    %179 = vmatprep.subr.mxu0 0.0
    %180 = vmatpush1.msra.mxu0 0.0
    %181 = vmatprep.subr.mxu0 0.0
    %182 = vmatpush1.msra.mxu0 0.0
    %183 = vmatprep.subr.mxu0 0.0
    %184 = vmatpush1.msra.mxu0 0.0
    %185 = vmatprep.subr.mxu0 0.0
    %186 = vmatpush1.msra.mxu0 0.0
    %187 = vmatprep.subr.mxu0 0.0
    %188 = vmatpush1.msra.mxu0 0.0
    %189 = vmatprep.subr.mxu0 0.0
    %190 = vmatpush1.msra.mxu0 0.0
    %191 = vmatprep.subr.mxu0 0.0
    %192 = vmatpush1.msra.mxu0 0.0
    %193 = vmatprep.subr.mxu0 0.0
    %194 = vmatpush1.msra.mxu0 0.0
    %195 = vmatprep.subr.mxu0 0.0
    %196 = vmatpush1.msra.mxu0 0.0
    %197 = vmatprep.subr.mxu0 %v159
    %198 = vmatpush1.msra.mxu0 %v158
    %199 = vmatprep.subr.mxu0 %v148
    %200 = vmatpush1.msra.mxu0 %v147
    %201 = vmatprep.subr.mxu0 %v132
    %202 = vmatpush1.msra.mxu0 %v136
    %203 = vmatprep.subr.mxu0 0.0
    %204 = vmatpush2.msra.mxu0 0.0
    %205 = vmatprep.subr.mxu0 0.0
    %206 = vmatpush2.msra.mxu0 0.0
    %207 = vmatprep.subr.mxu0 0.0
    %208 = vmatpush2.msra.mxu0 0.0
    %209 = vmatprep.subr.mxu0 0.0
    %210 = vmatpush2.msra.mxu0 0.0
    %211 = vmatprep.subr.mxu0 0.0
    %212 = vmatpush2.msra.mxu0 0.0
    %213 = vmatprep.subr.mxu0 0.0
    %214 = vmatpush2.msra.mxu0 0.0
    %215 = vmatprep.subr.mxu0 0.0
    %216 = vmatpush2.msra.mxu0 0.0
    %217 = vmatprep.subr.mxu0 0.0
    %218 = vmatpush2.msra.mxu0 0.0
    %219 = vmatprep.subr.mxu0 0.0
    %220 = vmatpush2.msra.mxu0 0.0
    %221 = vmatprep.subr.mxu0 0.0
    %222 = vmatpush2.msra.mxu0 0.0
    %223 = vmatprep.subr.mxu0 0.0
    %224 = vmatpush2.msra.mxu0 0.0
    %225 = vmatprep.subr.mxu0 0.0
    %226 = vmatpush2.msra.mxu0 0.0
    %227 = vmatprep.subr.mxu0 0.0
    %228 = vmatpush2.msra.mxu0 0.0
    %229 = vmatprep.subr.mxu0 0.0
    %230 = vmatpush2.msra.mxu0 0.0
    %231 = vmatprep.subr.mxu0 0.0
    %232 = vmatpush2.msra.mxu0 0.0
    %233 = vmatprep.subr.mxu0 0.0
    %234 = vmatpush2.msra.mxu0 0.0
    %235 = vmatprep.mubr.f32.mxu0 0.0
    %236 = vmatmul.mubr.f32.gmra.mxu0 %v169
    %v237 = vpop.f32.mrf.mxu0
    %v238 = vadd.f32 %v165, %v237
    %v239 = vpop.f32.mrf.mxu0
    %v240 = vadd.f32 %v165, %v239
    %241 = vdwg.mxu0
    %242 = vrot.lane.b32.xlu0 %v68, 1
    %v243 = vpop.permute.xlu0 %242
    %244 = vrot.lane.b32.xlu0 %v69, 1
    %v245 = vpop.permute.xlu0 %244
    %vm246 = vcmp.lt.s32.totalorder %v42, 1
    %v247 = vsel %vm246, %v243, %v245
    %v248 = vsel %vm246, %v245, %v243
    %249 = vrot.lane.b32.xlu0 %v68, 127
    %v250 = vpop.permute.xlu0 %249
    %251 = vrot.lane.b32.xlu0 %v69, 127
    %v252 = vpop.permute.xlu0 %251
    %vm253 = vcmp.lt.s32.totalorder %v42, 127
    %v254 = vsel %vm253, %v250, %v252
    %v255 = vsel %vm253, %v252, %v250
    %v256 = vadd.f32 %v68, %v254
    %v257 = vadd.f32 %v69, %v255
    %v258 = vadd.f32 %v248, %v68
    %v259 = vadd.f32 %v247, %v69
    %vm260 = vcmp.eq.s32.totalorder %v66, 0
    %vm261 = vcmp.eq.s32.totalorder %v67, 0
    %v262 = vsel %vm260, %v256, %v258
    %v263 = vsel %vm261, %v257, %v259
    %v264 = vmul.f32 %v262, 0.5
    %v265 = vmul.f32 %v263, 0.5
    %v266 = vmul.f32 %v264, %v264
    %v267 = vmul.f32 %v265, %v265
    %v268 = vadd.f32 %v266, %v267
    %269 = vadd.xlane.f32.xlu0 %v268
    %v270 = vpop.xlane.xlu0 %269
    %v271 = vrot.slane %v270, 4
    %v272 = vadd.f32 %v270, %v271
    %v273 = vrot.slane %v272, 2
    %v274 = vadd.f32 %v272, %v273
    %v275 = vrot.slane %v274, 1
    %v276 = vadd.f32 %v274, %v275
    %s277 = vtos %v276
    %v278 = vstv %s277
    %v279 = vmul.f32 %v278, %v99
    %v280 = vsub.f32 %v279, %v102
    %v281 = vmax.f32 %v280, 0.0
    %v282 = vadd.f32 %v281, 1e-05
    %v283 = vrsqrt.pop %v282
    %v284 = vadd.f32 %v72, 1.0
    %v285 = vmul.f32 %v283, %v284
    %v286 = vmul.f32 %v100, %v285
    %v287 = vsub.f32 %v73, %v286
    %289 = vset.pattern.permute.xlu0 0
    %290 = vperm.xlu0 %289, %v285
    %v291 = vpop.permute.xlu0 %290
    %v293 = vmul.f32 %v264, %v291
    %v294 = vmul.f32 %v265, %v291
    %296 = vset.pattern.permute.xlu0 0
    %297 = vperm.xlu0 %296, %v287
    %v298 = vpop.permute.xlu0 %297
    %v300 = vadd.f32 %v293, %v298
    %v301 = vadd.f32 %v294, %v298
    %302 = vrot.lane.b32.xlu0 %v300, 8
    %v303 = vpop.permute.xlu0 %302
    %304 = vrot.lane.b32.xlu0 %v301, 8
    %v305 = vpop.permute.xlu0 %304
    %vm306 = vcmp.lt.s32.totalorder %v42, 8
    %v307 = vsel %vm306, %v303, %v305
    %v308 = vsel %vm306, %v305, %v303
    %v309 = vlaneseq
    %v310 = vshrl.u32 %v309, 7
    %v311 = vsub.s32 0, %v310
    %v312 = vrot.slane %v37, %v311
    %v313 = vlaneseq
    %v314 = vshrl.u32 %v313, 7
    %v315 = vsub.s32 0, %v314
    %v316 = vrot.slane %v38, %v315
    %v317 = vmul.f32 %v312, %v308
    %v318 = vmul.f32 %v316, %v307
    %319 = vrot.lane.b32.xlu0 %v300, 6
    %v320 = vpop.permute.xlu0 %319
    %321 = vrot.lane.b32.xlu0 %v301, 6
    %v322 = vpop.permute.xlu0 %321
    %vm323 = vcmp.lt.s32.totalorder %v42, 6
    %v324 = vsel %vm323, %v320, %v322
    %v325 = vsel %vm323, %v322, %v320
    %v326 = vlaneseq
    %v327 = vshrl.u32 %v326, 7
    %v328 = vsub.s32 1, %v327
    %v329 = vrot.slane %v37, %v328
    %v330 = vlaneseq
    %v331 = vshrl.u32 %v330, 7
    %v332 = vsub.s32 1, %v331
    %v333 = vrot.slane %v38, %v332
    %v334 = vmul.f32 %v329, %v325
    %v335 = vmul.f32 %v333, %v324
    %v336 = vadd.f32 %v317, %v334
    %v337 = vadd.f32 %v318, %v335
    %338 = vrot.lane.b32.xlu0 %v300, 4
    %v339 = vpop.permute.xlu0 %338
    %340 = vrot.lane.b32.xlu0 %v301, 4
    %v341 = vpop.permute.xlu0 %340
    %vm342 = vcmp.lt.s32.totalorder %v42, 4
    %v343 = vsel %vm342, %v339, %v341
    %v344 = vsel %vm342, %v341, %v339
    %v345 = vlaneseq
    %v346 = vshrl.u32 %v345, 7
    %v347 = vsub.s32 2, %v346
    %v348 = vrot.slane %v37, %v347
    %v349 = vlaneseq
    %v350 = vshrl.u32 %v349, 7
    %v351 = vsub.s32 2, %v350
    %v352 = vrot.slane %v38, %v351
    %v353 = vmul.f32 %v348, %v344
    %v354 = vmul.f32 %v352, %v343
    %v355 = vadd.f32 %v336, %v353
    %v356 = vadd.f32 %v337, %v354
    %357 = vrot.lane.b32.xlu0 %v300, 2
    %v358 = vpop.permute.xlu0 %357
    %359 = vrot.lane.b32.xlu0 %v301, 2
    %v360 = vpop.permute.xlu0 %359
    %vm361 = vcmp.lt.s32.totalorder %v42, 2
    %v362 = vsel %vm361, %v358, %v360
    %v363 = vsel %vm361, %v360, %v358
    %v364 = vlaneseq
    %v365 = vshrl.u32 %v364, 7
    %v366 = vsub.s32 3, %v365
    %v367 = vrot.slane %v37, %v366
    %v368 = vlaneseq
    %v369 = vshrl.u32 %v368, 7
    %v370 = vsub.s32 3, %v369
    %v371 = vrot.slane %v38, %v370
    %v372 = vmul.f32 %v367, %v363
    %v373 = vmul.f32 %v371, %v362
    %v374 = vadd.f32 %v355, %v372
    %v375 = vadd.f32 %v356, %v373
    %v376 = vlaneseq
    %v377 = vshrl.u32 %v376, 7
    %v378 = vsub.s32 4, %v377
    %v379 = vrot.slane %v37, %v378
    %v380 = vlaneseq
    %v381 = vshrl.u32 %v380, 7
    %v382 = vsub.s32 4, %v381
    %v383 = vrot.slane %v38, %v382
    %v384 = vmul.f32 %v379, %v300
    %v385 = vmul.f32 %v383, %v301
    %v386 = vadd.f32 %v374, %v384
    %v387 = vadd.f32 %v375, %v385
    %388 = vrot.lane.b32.xlu0 %v300, 126
    %v389 = vpop.permute.xlu0 %388
    %390 = vrot.lane.b32.xlu0 %v301, 126
    %v391 = vpop.permute.xlu0 %390
    %vm392 = vcmp.lt.s32.totalorder %v42, 126
    %v393 = vsel %vm392, %v389, %v391
    %v394 = vsel %vm392, %v391, %v389
    %v395 = vlaneseq
    %v396 = vshrl.u32 %v395, 7
    %v397 = vsub.s32 5, %v396
    %v398 = vrot.slane %v37, %v397
    %v399 = vlaneseq
    %v400 = vshrl.u32 %v399, 7
    %v401 = vsub.s32 5, %v400
    %v402 = vrot.slane %v38, %v401
    %v403 = vmul.f32 %v398, %v393
    %v404 = vmul.f32 %v402, %v394
    %v405 = vadd.f32 %v386, %v403
    %v406 = vadd.f32 %v387, %v404
    %407 = vrot.lane.b32.xlu0 %v300, 124
    %v408 = vpop.permute.xlu0 %407
    %409 = vrot.lane.b32.xlu0 %v301, 124
    %v410 = vpop.permute.xlu0 %409
    %vm411 = vcmp.lt.s32.totalorder %v42, 124
    %v412 = vsel %vm411, %v408, %v410
    %v413 = vsel %vm411, %v410, %v408
    %v414 = vlaneseq
    %v415 = vshrl.u32 %v414, 7
    %v416 = vsub.s32 6, %v415
    %v417 = vrot.slane %v37, %v416
    %v418 = vlaneseq
    %v419 = vshrl.u32 %v418, 7
    %v420 = vsub.s32 6, %v419
    %v421 = vrot.slane %v38, %v420
    %v422 = vmul.f32 %v417, %v412
    %v423 = vmul.f32 %v421, %v413
    %v424 = vadd.f32 %v405, %v422
    %v425 = vadd.f32 %v406, %v423
    %426 = vrot.lane.b32.xlu0 %v300, 122
    %v427 = vpop.permute.xlu0 %426
    %428 = vrot.lane.b32.xlu0 %v301, 122
    %v429 = vpop.permute.xlu0 %428
    %vm430 = vcmp.lt.s32.totalorder %v42, 122
    %v431 = vsel %vm430, %v427, %v429
    %v432 = vsel %vm430, %v429, %v427
    %v433 = vlaneseq
    %v434 = vshrl.u32 %v433, 7
    %v435 = vsub.s32 7, %v434
    %v436 = vrot.slane %v37, %v435
    %v437 = vlaneseq
    %v438 = vshrl.u32 %v437, 7
    %v439 = vsub.s32 7, %v438
    %v440 = vrot.slane %v38, %v439
    %v441 = vmul.f32 %v436, %v431
    %v442 = vmul.f32 %v440, %v432
    %v443 = vadd.f32 %v424, %v441
    %v444 = vadd.f32 %v425, %v442
    %445 = vrot.lane.b32.xlu0 %v300, 120
    %v446 = vpop.permute.xlu0 %445
    %447 = vrot.lane.b32.xlu0 %v301, 120
    %v448 = vpop.permute.xlu0 %447
    %vm449 = vcmp.lt.s32.totalorder %v42, 120
    %v450 = vsel %vm449, %v446, %v448
    %v451 = vsel %vm449, %v448, %v446
    %v452 = vlaneseq
    %v453 = vshrl.u32 %v452, 7
    %v454 = vsub.s32 0, %v453
    %v455 = vrot.slane %v39, %v454
    %v456 = vlaneseq
    %v457 = vshrl.u32 %v456, 7
    %v458 = vsub.s32 0, %v457
    %v459 = vrot.slane %v40, %v458
    %v460 = vmul.f32 %v455, %v450
    %v461 = vmul.f32 %v459, %v451
    %v462 = vadd.f32 %v443, %v460
    %v463 = vadd.f32 %v444, %v461
    %v464 = vadd.f32 %v462, %v463
    %465 = vadd.xlane.f32.xlu0 %v464
    %v466 = vpop.xlane.xlu0 %465
    %v467 = vrot.slane %v466, 4
    %v468 = vadd.f32 %v466, %v467
    %v469 = vrot.slane %v468, 2
    %v470 = vadd.f32 %v468, %v469
    %v471 = vrot.slane %v470, 1
    %v472 = vadd.f32 %v470, %v471
    %s473 = vtos %v472
    %v474 = vstv %s473
    %v475 = vmul.f32 %v462, %v462
    %v476 = vmul.f32 %v463, %v463
    %v477 = vadd.f32 %v475, %v476
    %478 = vadd.xlane.f32.xlu0 %v477
    %v479 = vpop.xlane.xlu0 %478
    %v480 = vrot.slane %v479, 4
    %v481 = vadd.f32 %v479, %v480
    %v482 = vrot.slane %v481, 2
    %v483 = vadd.f32 %v481, %v482
    %v484 = vrot.slane %v483, 1
    %v485 = vadd.f32 %v483, %v484
    %s486 = vtos %v485
    %v487 = vstv %s486
    %v488 = vadd.f32 %v238, %v240
    %489 = vadd.xlane.f32.xlu0 %v488
    %v490 = vpop.xlane.xlu0 %489
    %v491 = vrot.slane %v490, 4
    %v492 = vadd.f32 %v490, %v491
    %v493 = vrot.slane %v492, 2
    %v494 = vadd.f32 %v492, %v493
    %v495 = vrot.slane %v494, 1
    %v496 = vadd.f32 %v494, %v495
    %s497 = vtos %v496
    %v498 = vstv %s497
    %v499 = vmul.f32 %v238, %v238
    %v500 = vmul.f32 %v240, %v240
    %v501 = vadd.f32 %v499, %v500
    %502 = vadd.xlane.f32.xlu0 %v501
    %v503 = vpop.xlane.xlu0 %502
    %v504 = vrot.slane %v503, 4
    %v505 = vadd.f32 %v503, %v504
    %v506 = vrot.slane %v505, 2
    %v507 = vadd.f32 %v505, %v506
    %v508 = vrot.slane %v507, 1
    %v509 = vadd.f32 %v507, %v508
    %s510 = vtos %v509
    %v511 = vstv %s510
    %v512 = vadd.f32 %v474, %v498
    %v513 = vrcp.pop 4096.0
    %v514 = vmul.f32 %v512, %v513
    %v515 = vadd.f32 %v487, %v511
    %v516 = vmul.f32 %v515, %v513
    %v517 = vmul.f32 %v514, %v514
    %v518 = vsub.f32 %v516, %v517
    %v519 = vmax.f32 %v518, 0.0
    %v520 = vadd.f32 %v519, 1e-05
    %v521 = vrsqrt.pop %v520
    %v522 = vadd.f32 %v74, 1.0
    %v523 = vmul.f32 %v521, %v522
    %v524 = vmul.f32 %v514, %v523
    %v526 = vrot.slane %v524, 6
    %v528 = vsub.f32 %v74, %v526
    %v529 = vlaneseq
    %v530 = vshrl.u32 %v529, 7
    %v531 = vsub.s32 2, %v530
    %v532 = vrot.slane %v528, %v531
    %v533 = vmul.f32 %v28, %v532
    %vm534 = vcmask 64512
    %v535 = vsel %vm534, %v533, 0.0
    %536 = vadd.xlane.f32.xlu0 %v535
    %v537 = vpop.xlane.xlu0 %536
    %v538 = vlaneseq
    %v539 = vshrl.u32 %v538, 7
    %v540 = vsub.s32 3, %v539
    %v541 = vrot.slane %v528, %v540
    %v542 = vmul.f32 %v29, %v541
    %v543 = vsel %vm534, %v542, 0.0
    %544 = vadd.xlane.f32.xlu0 %v543
    %v545 = vpop.xlane.xlu0 %544
    %v546 = vadd.f32 %v537, %v545
    %v547 = vadd.f32 %v546, %v34
    %v548 = vlaneseq
    %v549 = vshrl.u32 %v548, 7
    %v550 = vsub.s32 0, %v549
    %v551 = vrot.slane %v523, %v550
    %v552 = vmul.f32 %v28, %v551
    %v553 = vlaneseq
    %v554 = vshrl.u32 %v553, 7
    %v555 = vsub.s32 1, %v554
    %v556 = vrot.slane %v523, %v555
    %v557 = vmul.f32 %v29, %v556
    %v559 = vsel %vm534, %v557, 0
    %561 = vmatprep.subr.mxu0 0.0
    %562 = vmatpush1.msra.mxu0 0.0
    %563 = vmatprep.subr.mxu0 0.0
    %564 = vmatpush1.msra.mxu0 0.0
    %565 = vmatprep.subr.mxu0 0.0
    %566 = vmatpush1.msra.mxu0 0.0
    %567 = vmatprep.subr.mxu0 0.0
    %568 = vmatpush1.msra.mxu0 0.0
    %569 = vmatprep.subr.mxu0 0.0
    %570 = vmatpush1.msra.mxu0 0.0
    %571 = vmatprep.subr.mxu0 0.0
    %572 = vmatpush1.msra.mxu0 0.0
    %573 = vmatprep.subr.mxu0 0.0
    %574 = vmatpush1.msra.mxu0 0.0
    %575 = vmatprep.subr.mxu0 0.0
    %576 = vmatpush1.msra.mxu0 0.0
    %577 = vmatprep.subr.mxu0 0.0
    %578 = vmatpush1.msra.mxu0 0.0
    %579 = vmatprep.subr.mxu0 0.0
    %580 = vmatpush1.msra.mxu0 0.0
    %581 = vmatprep.subr.mxu0 0.0
    %582 = vmatpush1.msra.mxu0 0.0
    %583 = vmatprep.subr.mxu0 0.0
    %584 = vmatpush1.msra.mxu0 0.0
    %585 = vmatprep.subr.mxu0 0.0
    %586 = vmatpush1.msra.mxu0 0.0
    %587 = vmatprep.subr.mxu0 0.0
    %588 = vmatpush1.msra.mxu0 0.0
    %589 = vmatprep.subr.mxu0 0.0
    %590 = vmatpush1.msra.mxu0 0.0
    %591 = vmatprep.subr.mxu0 %v240
    %592 = vmatpush1.msra.mxu0 %v238
    %593 = vmatprep.subr.mxu0 0.0
    %594 = vmatpush2.msra.mxu0 0.0
    %595 = vmatprep.subr.mxu0 0.0
    %596 = vmatpush2.msra.mxu0 0.0
    %597 = vmatprep.subr.mxu0 0.0
    %598 = vmatpush2.msra.mxu0 0.0
    %599 = vmatprep.subr.mxu0 0.0
    %600 = vmatpush2.msra.mxu0 0.0
    %601 = vmatprep.subr.mxu0 0.0
    %602 = vmatpush2.msra.mxu0 0.0
    %603 = vmatprep.subr.mxu0 0.0
    %604 = vmatpush2.msra.mxu0 0.0
    %605 = vmatprep.subr.mxu0 0.0
    %606 = vmatpush2.msra.mxu0 0.0
    %607 = vmatprep.subr.mxu0 0.0
    %608 = vmatpush2.msra.mxu0 0.0
    %609 = vmatprep.subr.mxu0 0.0
    %610 = vmatpush2.msra.mxu0 0.0
    %611 = vmatprep.subr.mxu0 0.0
    %612 = vmatpush2.msra.mxu0 0.0
    %613 = vmatprep.subr.mxu0 0.0
    %614 = vmatpush2.msra.mxu0 0.0
    %615 = vmatprep.subr.mxu0 0.0
    %616 = vmatpush2.msra.mxu0 0.0
    %617 = vmatprep.subr.mxu0 0.0
    %618 = vmatpush2.msra.mxu0 0.0
    %619 = vmatprep.subr.mxu0 0.0
    %620 = vmatpush2.msra.mxu0 0.0
    %621 = vmatprep.subr.mxu0 0.0
    %622 = vmatpush2.msra.mxu0 0.0
    %623 = vmatprep.subr.mxu0 0.0
    %624 = vmatpush2.msra.mxu0 0.0
    %625 = vmatprep.mubr.f32.mxu0 0.0
    %626 = vmatmul.mubr.f32.gmra.mxu0 %v559
    %v627 = vpop.f32.mrf.mxu0
    %v628 = vadd.f32 0.0, %v627
    %v629 = vpop.f32.mrf.mxu0
    %v630 = vadd.f32 0.0, %v629
    %631 = vdwg.mxu0
    %v633 = vsel %vm534, %v552, 0
    %635 = vmatprep.subr.mxu0 0.0
    %636 = vmatpush1.msra.mxu0 0.0
    %637 = vmatprep.subr.mxu0 0.0
    %638 = vmatpush1.msra.mxu0 0.0
    %639 = vmatprep.subr.mxu0 0.0
    %640 = vmatpush1.msra.mxu0 0.0
    %641 = vmatprep.subr.mxu0 0.0
    %642 = vmatpush1.msra.mxu0 0.0
    %643 = vmatprep.subr.mxu0 0.0
    %644 = vmatpush1.msra.mxu0 0.0
    %645 = vmatprep.subr.mxu0 0.0
    %646 = vmatpush1.msra.mxu0 0.0
    %647 = vmatprep.subr.mxu0 0.0
    %648 = vmatpush1.msra.mxu0 0.0
    %649 = vmatprep.subr.mxu0 0.0
    %650 = vmatpush1.msra.mxu0 0.0
    %651 = vmatprep.subr.mxu0 0.0
    %652 = vmatpush1.msra.mxu0 0.0
    %653 = vmatprep.subr.mxu0 0.0
    %654 = vmatpush1.msra.mxu0 0.0
    %655 = vmatprep.subr.mxu0 0.0
    %656 = vmatpush1.msra.mxu0 0.0
    %657 = vmatprep.subr.mxu0 0.0
    %658 = vmatpush1.msra.mxu0 0.0
    %659 = vmatprep.subr.mxu0 0.0
    %660 = vmatpush1.msra.mxu0 0.0
    %661 = vmatprep.subr.mxu0 0.0
    %662 = vmatpush1.msra.mxu0 0.0
    %663 = vmatprep.subr.mxu0 0.0
    %664 = vmatpush1.msra.mxu0 0.0
    %665 = vmatprep.subr.mxu0 %v463
    %666 = vmatpush1.msra.mxu0 %v462
    %667 = vmatprep.subr.mxu0 0.0
    %668 = vmatpush2.msra.mxu0 0.0
    %669 = vmatprep.subr.mxu0 0.0
    %670 = vmatpush2.msra.mxu0 0.0
    %671 = vmatprep.subr.mxu0 0.0
    %672 = vmatpush2.msra.mxu0 0.0
    %673 = vmatprep.subr.mxu0 0.0
    %674 = vmatpush2.msra.mxu0 0.0
    %675 = vmatprep.subr.mxu0 0.0
    %676 = vmatpush2.msra.mxu0 0.0
    %677 = vmatprep.subr.mxu0 0.0
    %678 = vmatpush2.msra.mxu0 0.0
    %679 = vmatprep.subr.mxu0 0.0
    %680 = vmatpush2.msra.mxu0 0.0
    %681 = vmatprep.subr.mxu0 0.0
    %682 = vmatpush2.msra.mxu0 0.0
    %683 = vmatprep.subr.mxu0 0.0
    %684 = vmatpush2.msra.mxu0 0.0
    %685 = vmatprep.subr.mxu0 0.0
    %686 = vmatpush2.msra.mxu0 0.0
    %687 = vmatprep.subr.mxu0 0.0
    %688 = vmatpush2.msra.mxu0 0.0
    %689 = vmatprep.subr.mxu0 0.0
    %690 = vmatpush2.msra.mxu0 0.0
    %691 = vmatprep.subr.mxu0 0.0
    %692 = vmatpush2.msra.mxu0 0.0
    %693 = vmatprep.subr.mxu0 0.0
    %694 = vmatpush2.msra.mxu0 0.0
    %695 = vmatprep.subr.mxu0 0.0
    %696 = vmatpush2.msra.mxu0 0.0
    %697 = vmatprep.subr.mxu0 0.0
    %698 = vmatpush2.msra.mxu0 0.0
    %699 = vmatprep.mubr.f32.mxu0 0.0
    %700 = vmatmul.mubr.f32.gmra.mxu0 %v633
    %v701 = vpop.f32.mrf.mxu0
    %v702 = vadd.f32 %v628, %v701
    %v703 = vpop.f32.mrf.mxu0
    %v704 = vadd.f32 %v630, %v703
    %705 = vdwg.mxu0
    %707 = vset.pattern.permute.xlu0 0
    %708 = vperm.xlu0 %707, %v547
    %v709 = vpop.permute.xlu0 %708
    %v711 = vadd.f32 %v702, %v709
    %v712 = vadd.f32 %v704, %v709
    %v713 = vxor.u32 %v711, 2147483648
    %v714 = vxor.u32 %v712, 2147483648
    %v715 = vmul.f32 %v713, 1.442695
    %v716 = vpow.pop %v715
    %v717 = vmul.f32 %v714, 1.442695
    %v718 = vpow.pop %v717
    %v719 = vadd.f32 %v716, 1.0
    %v720 = vadd.f32 %v718, 1.0
    %v721 = vrcp.pop %v719
    %v722 = vmul.f32 1.0, %v721
    %v723 = vrcp.pop %v720
    %v724 = vmul.f32 1.0, %v723
    %v725 = vmul.f32 %v711, %v722
    %v726 = vmul.f32 %v712, %v724
    %728 = vset.pattern.permute.xlu0 0
    %729 = vperm.xlu0 %728, %v35
    %v730 = vpop.permute.xlu0 %729
    %v733 = vsel %vm534, %v30, 0
    %735 = vmatprep.subr.mxu0 0.0
    %736 = vmatpush1.msra.mxu0 0.0
    %737 = vmatprep.subr.mxu0 0.0
    %738 = vmatpush1.msra.mxu0 0.0
    %739 = vmatprep.subr.mxu0 0.0
    %740 = vmatpush1.msra.mxu0 0.0
    %741 = vmatprep.subr.mxu0 0.0
    %742 = vmatpush1.msra.mxu0 0.0
    %743 = vmatprep.subr.mxu0 0.0
    %744 = vmatpush1.msra.mxu0 0.0
    %745 = vmatprep.subr.mxu0 0.0
    %746 = vmatpush1.msra.mxu0 0.0
    %747 = vmatprep.subr.mxu0 0.0
    %748 = vmatpush1.msra.mxu0 0.0
    %749 = vmatprep.subr.mxu0 0.0
    %750 = vmatpush1.msra.mxu0 0.0
    %751 = vmatprep.subr.mxu0 0.0
    %752 = vmatpush1.msra.mxu0 0.0
    %753 = vmatprep.subr.mxu0 0.0
    %754 = vmatpush1.msra.mxu0 0.0
    %755 = vmatprep.subr.mxu0 0.0
    %756 = vmatpush1.msra.mxu0 0.0
    %757 = vmatprep.subr.mxu0 0.0
    %758 = vmatpush1.msra.mxu0 0.0
    %759 = vmatprep.subr.mxu0 0.0
    %760 = vmatpush1.msra.mxu0 0.0
    %761 = vmatprep.subr.mxu0 0.0
    %762 = vmatpush1.msra.mxu0 0.0
    %763 = vmatprep.subr.mxu0 0.0
    %764 = vmatpush1.msra.mxu0 0.0
    %765 = vmatprep.subr.mxu0 %v726
    %766 = vmatpush1.msra.mxu0 %v725
    %767 = vmatprep.subr.mxu0 0.0
    %768 = vmatpush2.msra.mxu0 0.0
    %769 = vmatprep.subr.mxu0 0.0
    %770 = vmatpush2.msra.mxu0 0.0
    %771 = vmatprep.subr.mxu0 0.0
    %772 = vmatpush2.msra.mxu0 0.0
    %773 = vmatprep.subr.mxu0 0.0
    %774 = vmatpush2.msra.mxu0 0.0
    %775 = vmatprep.subr.mxu0 0.0
    %776 = vmatpush2.msra.mxu0 0.0
    %777 = vmatprep.subr.mxu0 0.0
    %778 = vmatpush2.msra.mxu0 0.0
    %779 = vmatprep.subr.mxu0 0.0
    %780 = vmatpush2.msra.mxu0 0.0
    %781 = vmatprep.subr.mxu0 0.0
    %782 = vmatpush2.msra.mxu0 0.0
    %783 = vmatprep.subr.mxu0 0.0
    %784 = vmatpush2.msra.mxu0 0.0
    %785 = vmatprep.subr.mxu0 0.0
    %786 = vmatpush2.msra.mxu0 0.0
    %787 = vmatprep.subr.mxu0 0.0
    %788 = vmatpush2.msra.mxu0 0.0
    %789 = vmatprep.subr.mxu0 0.0
    %790 = vmatpush2.msra.mxu0 0.0
    %791 = vmatprep.subr.mxu0 0.0
    %792 = vmatpush2.msra.mxu0 0.0
    %793 = vmatprep.subr.mxu0 0.0
    %794 = vmatpush2.msra.mxu0 0.0
    %795 = vmatprep.subr.mxu0 0.0
    %796 = vmatpush2.msra.mxu0 0.0
    %797 = vmatprep.subr.mxu0 0.0
    %798 = vmatpush2.msra.mxu0 0.0
    %799 = vmatprep.mubr.f32.mxu0 0.0
    %800 = vmatmul.mubr.f32.gmra.mxu0 %v733
    %v801 = vpop.f32.mrf.mxu0
    %v802 = vadd.f32 %v730, %v801
    %v803 = vpop.f32.mrf.mxu0
    %v804 = vadd.f32 %v730, %v803
    %805 = vdwg.mxu0
    %v806 = vmul.f32 %v238, %v802
    %v807 = vmul.f32 %v240, %v804
    %v808 = vadd.f32 %v806, %v807
    %809 = vadd.xlane.f32.xlu0 %v808
    %v810 = vpop.xlane.xlu0 %809
    %v811 = vrot.slane %v810, 4
    %v812 = vadd.f32 %v810, %v811
    %v813 = vrot.slane %v812, 2
    %v814 = vadd.f32 %v812, %v813
    %v815 = vrot.slane %v814, 1
    %v816 = vadd.f32 %v814, %v815
    %s817 = vtos %v816
    %v818 = vstv %s817
    %v819 = vmul.f32 %v806, %v806
    %v820 = vmul.f32 %v807, %v807
    %v821 = vadd.f32 %v819, %v820
    %822 = vadd.xlane.f32.xlu0 %v821
    %v823 = vpop.xlane.xlu0 %822
    %v824 = vrot.slane %v823, 4
    %v825 = vadd.f32 %v823, %v824
    %v826 = vrot.slane %v825, 2
    %v827 = vadd.f32 %v825, %v826
    %v828 = vrot.slane %v827, 1
    %v829 = vadd.f32 %v827, %v828
    %s830 = vtos %v829
    %v831 = vstv %s830
    %v832 = vadd.f32 %v474, %v818
    %v833 = vmul.f32 %v832, %v513
    %v834 = vadd.f32 %v487, %v831
    %v835 = vmul.f32 %v834, %v513
    %v836 = vmul.f32 %v833, %v833
    %v837 = vsub.f32 %v835, %v836
    %v838 = vmax.f32 %v837, 0.0
    %v839 = vadd.f32 %v838, 1e-05
    %v840 = vrsqrt.pop %v839
    %v841 = vmul.f32 %v840, %v522
    %v842 = vmul.f32 %v833, %v841
    %v844 = vrot.slane %v842, 6
    %v846 = vsub.f32 %v74, %v844
    %v847 = vlaneseq
    %v848 = vshrl.u32 %v847, 7
    %v849 = vsub.s32 6, %v848
    %v850 = vrot.slane %v846, %v849
    %v851 = vmul.f32 %v31, %v850
    %v852 = vsel %vm534, %v851, 0.0
    %853 = vadd.xlane.f32.xlu0 %v852
    %v854 = vpop.xlane.xlu0 %853
    %v855 = vlaneseq
    %v856 = vshrl.u32 %v855, 7
    %v857 = vsub.s32 7, %v856
    %v858 = vrot.slane %v846, %v857
    %v859 = vmul.f32 %v32, %v858
    %v860 = vsel %vm534, %v859, 0.0
    %861 = vadd.xlane.f32.xlu0 %v860
    %v862 = vpop.xlane.xlu0 %861
    %v863 = vadd.f32 %v854, %v862
    %v864 = vadd.f32 %v863, %v36
    %v865 = vlaneseq
    %v866 = vshrl.u32 %v865, 7
    %v867 = vsub.s32 4, %v866
    %v868 = vrot.slane %v841, %v867
    %v869 = vmul.f32 %v31, %v868
    %v870 = vlaneseq
    %v871 = vshrl.u32 %v870, 7
    %v872 = vsub.s32 5, %v871
    %v873 = vrot.slane %v841, %v872
    %v874 = vmul.f32 %v32, %v873
    %v876 = vsel %vm534, %v874, 0
    %878 = vmatprep.subr.mxu0 0.0
    %879 = vmatpush1.msra.mxu0 0.0
    %880 = vmatprep.subr.mxu0 0.0
    %881 = vmatpush1.msra.mxu0 0.0
    %882 = vmatprep.subr.mxu0 0.0
    %883 = vmatpush1.msra.mxu0 0.0
    %884 = vmatprep.subr.mxu0 0.0
    %885 = vmatpush1.msra.mxu0 0.0
    %886 = vmatprep.subr.mxu0 0.0
    %887 = vmatpush1.msra.mxu0 0.0
    %888 = vmatprep.subr.mxu0 0.0
    %889 = vmatpush1.msra.mxu0 0.0
    %890 = vmatprep.subr.mxu0 0.0
    %891 = vmatpush1.msra.mxu0 0.0
    %892 = vmatprep.subr.mxu0 0.0
    %893 = vmatpush1.msra.mxu0 0.0
    %894 = vmatprep.subr.mxu0 0.0
    %895 = vmatpush1.msra.mxu0 0.0
    %896 = vmatprep.subr.mxu0 0.0
    %897 = vmatpush1.msra.mxu0 0.0
    %898 = vmatprep.subr.mxu0 0.0
    %899 = vmatpush1.msra.mxu0 0.0
    %900 = vmatprep.subr.mxu0 0.0
    %901 = vmatpush1.msra.mxu0 0.0
    %902 = vmatprep.subr.mxu0 0.0
    %903 = vmatpush1.msra.mxu0 0.0
    %904 = vmatprep.subr.mxu0 0.0
    %905 = vmatpush1.msra.mxu0 0.0
    %906 = vmatprep.subr.mxu0 0.0
    %907 = vmatpush1.msra.mxu0 0.0
    %908 = vmatprep.subr.mxu0 %v807
    %909 = vmatpush1.msra.mxu0 %v806
    %910 = vmatprep.subr.mxu0 0.0
    %911 = vmatpush2.msra.mxu0 0.0
    %912 = vmatprep.subr.mxu0 0.0
    %913 = vmatpush2.msra.mxu0 0.0
    %914 = vmatprep.subr.mxu0 0.0
    %915 = vmatpush2.msra.mxu0 0.0
    %916 = vmatprep.subr.mxu0 0.0
    %917 = vmatpush2.msra.mxu0 0.0
    %918 = vmatprep.subr.mxu0 0.0
    %919 = vmatpush2.msra.mxu0 0.0
    %920 = vmatprep.subr.mxu0 0.0
    %921 = vmatpush2.msra.mxu0 0.0
    %922 = vmatprep.subr.mxu0 0.0
    %923 = vmatpush2.msra.mxu0 0.0
    %924 = vmatprep.subr.mxu0 0.0
    %925 = vmatpush2.msra.mxu0 0.0
    %926 = vmatprep.subr.mxu0 0.0
    %927 = vmatpush2.msra.mxu0 0.0
    %928 = vmatprep.subr.mxu0 0.0
    %929 = vmatpush2.msra.mxu0 0.0
    %930 = vmatprep.subr.mxu0 0.0
    %931 = vmatpush2.msra.mxu0 0.0
    %932 = vmatprep.subr.mxu0 0.0
    %933 = vmatpush2.msra.mxu0 0.0
    %934 = vmatprep.subr.mxu0 0.0
    %935 = vmatpush2.msra.mxu0 0.0
    %936 = vmatprep.subr.mxu0 0.0
    %937 = vmatpush2.msra.mxu0 0.0
    %938 = vmatprep.subr.mxu0 0.0
    %939 = vmatpush2.msra.mxu0 0.0
    %940 = vmatprep.subr.mxu0 0.0
    %941 = vmatpush2.msra.mxu0 0.0
    %942 = vmatprep.mubr.f32.mxu0 0.0
    %943 = vmatmul.mubr.f32.gmra.mxu0 %v876
    %v944 = vpop.f32.mrf.mxu0
    %v945 = vadd.f32 0.0, %v944
    %v946 = vpop.f32.mrf.mxu0
    %v947 = vadd.f32 0.0, %v946
    %948 = vdwg.mxu0
    %v950 = vsel %vm534, %v869, 0
    %952 = vmatprep.subr.mxu0 0.0
    %953 = vmatpush1.msra.mxu0 0.0
    %954 = vmatprep.subr.mxu0 0.0
    %955 = vmatpush1.msra.mxu0 0.0
    %956 = vmatprep.subr.mxu0 0.0
    %957 = vmatpush1.msra.mxu0 0.0
    %958 = vmatprep.subr.mxu0 0.0
    %959 = vmatpush1.msra.mxu0 0.0
    %960 = vmatprep.subr.mxu0 0.0
    %961 = vmatpush1.msra.mxu0 0.0
    %962 = vmatprep.subr.mxu0 0.0
    %963 = vmatpush1.msra.mxu0 0.0
    %964 = vmatprep.subr.mxu0 0.0
    %965 = vmatpush1.msra.mxu0 0.0
    %966 = vmatprep.subr.mxu0 0.0
    %967 = vmatpush1.msra.mxu0 0.0
    %968 = vmatprep.subr.mxu0 0.0
    %969 = vmatpush1.msra.mxu0 0.0
    %970 = vmatprep.subr.mxu0 0.0
    %971 = vmatpush1.msra.mxu0 0.0
    %972 = vmatprep.subr.mxu0 0.0
    %973 = vmatpush1.msra.mxu0 0.0
    %974 = vmatprep.subr.mxu0 0.0
    %975 = vmatpush1.msra.mxu0 0.0
    %976 = vmatprep.subr.mxu0 0.0
    %977 = vmatpush1.msra.mxu0 0.0
    %978 = vmatprep.subr.mxu0 0.0
    %979 = vmatpush1.msra.mxu0 0.0
    %980 = vmatprep.subr.mxu0 0.0
    %981 = vmatpush1.msra.mxu0 0.0
    %982 = vmatprep.subr.mxu0 %v463
    %983 = vmatpush1.msra.mxu0 %v462
    %984 = vmatprep.subr.mxu0 0.0
    %985 = vmatpush2.msra.mxu0 0.0
    %986 = vmatprep.subr.mxu0 0.0
    %987 = vmatpush2.msra.mxu0 0.0
    %988 = vmatprep.subr.mxu0 0.0
    %989 = vmatpush2.msra.mxu0 0.0
    %990 = vmatprep.subr.mxu0 0.0
    %991 = vmatpush2.msra.mxu0 0.0
    %992 = vmatprep.subr.mxu0 0.0
    %993 = vmatpush2.msra.mxu0 0.0
    %994 = vmatprep.subr.mxu0 0.0
    %995 = vmatpush2.msra.mxu0 0.0
    %996 = vmatprep.subr.mxu0 0.0
    %997 = vmatpush2.msra.mxu0 0.0
    %998 = vmatprep.subr.mxu0 0.0
    %999 = vmatpush2.msra.mxu0 0.0
    %1000 = vmatprep.subr.mxu0 0.0
    %1001 = vmatpush2.msra.mxu0 0.0
    %1002 = vmatprep.subr.mxu0 0.0
    %1003 = vmatpush2.msra.mxu0 0.0
    %1004 = vmatprep.subr.mxu0 0.0
    %1005 = vmatpush2.msra.mxu0 0.0
    %1006 = vmatprep.subr.mxu0 0.0
    %1007 = vmatpush2.msra.mxu0 0.0
    %1008 = vmatprep.subr.mxu0 0.0
    %1009 = vmatpush2.msra.mxu0 0.0
    %1010 = vmatprep.subr.mxu0 0.0
    %1011 = vmatpush2.msra.mxu0 0.0
    %1012 = vmatprep.subr.mxu0 0.0
    %1013 = vmatpush2.msra.mxu0 0.0
    %1014 = vmatprep.subr.mxu0 0.0
    %1015 = vmatpush2.msra.mxu0 0.0
    %1016 = vmatprep.mubr.f32.mxu0 0.0
    %1017 = vmatmul.mubr.f32.gmra.mxu0 %v950
    %v1018 = vpop.f32.mrf.mxu0
    %v1019 = vadd.f32 %v945, %v1018
    %v1020 = vpop.f32.mrf.mxu0
    %v1021 = vadd.f32 %v947, %v1020
    %1022 = vdwg.mxu0
    %1024 = vset.pattern.permute.xlu0 0
    %1025 = vperm.xlu0 %1024, %v864
    %v1026 = vpop.permute.xlu0 %1025
    %v1028 = vadd.f32 %v1019, %v1026
    %v1029 = vadd.f32 %v1021, %v1026
    %1030 = vst [vmem:[#allocation2] sm:$0xff] %v1028
    %1031 = vst [vmem:[#allocation2 + $0x8] sm:$0xff] %v1029
    %s1032 = scalar_lea.vmem %s0, 16
    %v1033 = vld [vmem:[%s1032] sm:$0xff]
    %v1034 = vld [vmem:[%s1032 + $0x8] sm:$0xff]
    %s1035 = scalar_lea.vmem %s1, 32
    %v1036 = vld [vmem:[%s1035] sm:$0xff]
    %v1037 = vld [vmem:[%s1035 + $0x8] sm:$0xff]
    %v1038 = vld [vmem:[%s1035 + $0x10] sm:$0xff]
    %v1039 = vld [vmem:[%s1035 + $0x18] sm:$0xff]
    %s1040 = scalar_lea.vmem %s2, 8
    %v1041 = vld [vmem:[%s1040] sm:$0xff]
    %v1042 = vadd.f32 %v1033, %v1034
    %1043 = vadd.xlane.f32.xlu0 %v1042
    %v1044 = vpop.xlane.xlu0 %1043
    %v1045 = vrot.slane %v1044, 4
    %v1046 = vadd.f32 %v1044, %v1045
    %v1047 = vrot.slane %v1046, 2
    %v1048 = vadd.f32 %v1046, %v1047
    %v1049 = vrot.slane %v1048, 1
    %v1050 = vadd.f32 %v1048, %v1049
    %s1051 = vtos %v1050
    %v1052 = vstv %s1051
    %v1053 = vmul.f32 %v1033, %v1033
    %v1054 = vmul.f32 %v1034, %v1034
    %v1055 = vadd.f32 %v1053, %v1054
    %1056 = vadd.xlane.f32.xlu0 %v1055
    %v1057 = vpop.xlane.xlu0 %1056
    %v1058 = vrot.slane %v1057, 4
    %v1059 = vadd.f32 %v1057, %v1058
    %v1060 = vrot.slane %v1059, 2
    %v1061 = vadd.f32 %v1059, %v1060
    %v1062 = vrot.slane %v1061, 1
    %v1063 = vadd.f32 %v1061, %v1062
    %s1064 = vtos %v1063
    %v1065 = vstv %s1064
    %v1066 = vmul.f32 %v1052, %v99
    %v1067 = vmul.f32 %v1065, %v99
    %v1068 = vmul.f32 %v1066, %v1066
    %v1069 = vsub.f32 %v1067, %v1068
    %v1070 = vmax.f32 %v1069, 0.0
    %v1071 = vadd.f32 %v1070, 1e-05
    %v1072 = vrsqrt.pop %v1071
    %v1073 = vadd.f32 %v1036, 1.0
    %v1074 = vmul.f32 %v1072, %v1073
    %v1075 = vmul.f32 %v1066, %v1074
    %v1076 = vsub.f32 %v1037, %v1075
    %1078 = vset.pattern.permute.xlu0 0
    %1079 = vperm.xlu0 %1078, %v1074
    %v1080 = vpop.permute.xlu0 %1079
    %v1082 = vmul.f32 %v1033, %v1080
    %v1083 = vmul.f32 %v1034, %v1080
    %1085 = vset.pattern.permute.xlu0 0
    %1086 = vperm.xlu0 %1085, %v1076
    %v1087 = vpop.permute.xlu0 %1086
    %v1089 = vadd.f32 %v1082, %v1087
    %v1090 = vadd.f32 %v1083, %v1087
    %1093 = vrot.lane.b32.xlu0 %v1089, 1
    %v1094 = vpop.permute.xlu0 %1093
    %1095 = vrot.lane.b32.xlu0 %v1090, 1
    %v1096 = vpop.permute.xlu0 %1095
    %v1097 = vsel %vm131, %v1094, %v1096
    %v1101 = vsel %vm131, 0.0, %v1094
    %v1102 = vsel %vm131, %v1096, 0.0
    %1105 = vrot.lane.b32.xlu0 %v1101, 127
    %v1106 = vpop.permute.xlu0 %1105
    %1107 = vrot.lane.b32.xlu0 %v1097, 127
    %v1108 = vpop.permute.xlu0 %1107
    %1109 = vrot.lane.b32.xlu0 %v1102, 127
    %v1110 = vpop.permute.xlu0 %1109
    %v1111 = vsel %vm146, %v1106, %v1108
    %v1112 = vsel %vm146, %v1108, %v1110
    %1115 = vrot.lane.b32.xlu0 %v1101, 126
    %v1116 = vpop.permute.xlu0 %1115
    %1117 = vrot.lane.b32.xlu0 %v1097, 126
    %v1118 = vpop.permute.xlu0 %1117
    %1119 = vrot.lane.b32.xlu0 %v1102, 126
    %v1120 = vpop.permute.xlu0 %1119
    %v1121 = vsel %vm157, %v1116, %v1118
    %v1122 = vsel %vm157, %v1118, %v1120
    %1125 = vmatprep.subr.mxu0 0.0
    %1126 = vmatpush1.msra.mxu0 0.0
    %1127 = vmatprep.subr.mxu0 0.0
    %1128 = vmatpush1.msra.mxu0 0.0
    %1129 = vmatprep.subr.mxu0 0.0
    %1130 = vmatpush1.msra.mxu0 0.0
    %1131 = vmatprep.subr.mxu0 0.0
    %1132 = vmatpush1.msra.mxu0 0.0
    %1133 = vmatprep.subr.mxu0 0.0
    %1134 = vmatpush1.msra.mxu0 0.0
    %1135 = vmatprep.subr.mxu0 0.0
    %1136 = vmatpush1.msra.mxu0 0.0
    %1137 = vmatprep.subr.mxu0 0.0
    %1138 = vmatpush1.msra.mxu0 0.0
    %1139 = vmatprep.subr.mxu0 0.0
    %1140 = vmatpush1.msra.mxu0 0.0
    %1141 = vmatprep.subr.mxu0 0.0
    %1142 = vmatpush1.msra.mxu0 0.0
    %1143 = vmatprep.subr.mxu0 0.0
    %1144 = vmatpush1.msra.mxu0 0.0
    %1145 = vmatprep.subr.mxu0 0.0
    %1146 = vmatpush1.msra.mxu0 0.0
    %1147 = vmatprep.subr.mxu0 0.0
    %1148 = vmatpush1.msra.mxu0 0.0
    %1149 = vmatprep.subr.mxu0 0.0
    %1150 = vmatpush1.msra.mxu0 0.0
    %1151 = vmatprep.subr.mxu0 %v1122
    %1152 = vmatpush1.msra.mxu0 %v1121
    %1153 = vmatprep.subr.mxu0 %v1112
    %1154 = vmatpush1.msra.mxu0 %v1111
    %1155 = vmatprep.subr.mxu0 %v1097
    %1156 = vmatpush1.msra.mxu0 %v1101
    %1157 = vmatprep.subr.mxu0 0.0
    %1158 = vmatpush2.msra.mxu0 0.0
    %1159 = vmatprep.subr.mxu0 0.0
    %1160 = vmatpush2.msra.mxu0 0.0
    %1161 = vmatprep.subr.mxu0 0.0
    %1162 = vmatpush2.msra.mxu0 0.0
    %1163 = vmatprep.subr.mxu0 0.0
    %1164 = vmatpush2.msra.mxu0 0.0
    %1165 = vmatprep.subr.mxu0 0.0
    %1166 = vmatpush2.msra.mxu0 0.0
    %1167 = vmatprep.subr.mxu0 0.0
    %1168 = vmatpush2.msra.mxu0 0.0
    %1169 = vmatprep.subr.mxu0 0.0
    %1170 = vmatpush2.msra.mxu0 0.0
    %1171 = vmatprep.subr.mxu0 0.0
    %1172 = vmatpush2.msra.mxu0 0.0
    %1173 = vmatprep.subr.mxu0 0.0
    %1174 = vmatpush2.msra.mxu0 0.0
    %1175 = vmatprep.subr.mxu0 0.0
    %1176 = vmatpush2.msra.mxu0 0.0
    %1177 = vmatprep.subr.mxu0 0.0
    %1178 = vmatpush2.msra.mxu0 0.0
    %1179 = vmatprep.subr.mxu0 0.0
    %1180 = vmatpush2.msra.mxu0 0.0
    %1181 = vmatprep.subr.mxu0 0.0
    %1182 = vmatpush2.msra.mxu0 0.0
    %1183 = vmatprep.subr.mxu0 0.0
    %1184 = vmatpush2.msra.mxu0 0.0
    %1185 = vmatprep.subr.mxu0 0.0
    %1186 = vmatpush2.msra.mxu0 0.0
    %1187 = vmatprep.subr.mxu0 0.0
    %1188 = vmatpush2.msra.mxu0 0.0
    %1189 = vmatprep.mubr.f32.mxu0 0.0
    %1190 = vmatmul.mubr.f32.gmra.mxu0 %v169
    %v1191 = vpop.f32.mrf.mxu0
    %v1192 = vadd.f32 %v165, %v1191
    %v1193 = vpop.f32.mrf.mxu0
    %v1194 = vadd.f32 %v165, %v1193
    %1195 = vdwg.mxu0
    %1196 = vrot.lane.b32.xlu0 %v1033, 1
    %v1197 = vpop.permute.xlu0 %1196
    %1198 = vrot.lane.b32.xlu0 %v1034, 1
    %v1199 = vpop.permute.xlu0 %1198
    %v1200 = vsel %vm246, %v1197, %v1199
    %v1201 = vsel %vm246, %v1199, %v1197
    %1202 = vrot.lane.b32.xlu0 %v1033, 127
    %v1203 = vpop.permute.xlu0 %1202
    %1204 = vrot.lane.b32.xlu0 %v1034, 127
    %v1205 = vpop.permute.xlu0 %1204
    %v1206 = vsel %vm253, %v1203, %v1205
    %v1207 = vsel %vm253, %v1205, %v1203
    %v1208 = vadd.f32 %v1033, %v1206
    %v1209 = vadd.f32 %v1034, %v1207
    %v1210 = vadd.f32 %v1201, %v1033
    %v1211 = vadd.f32 %v1200, %v1034
    %v1212 = vsel %vm260, %v1208, %v1210
    %v1213 = vsel %vm261, %v1209, %v1211
    %v1214 = vmul.f32 %v1212, 0.5
    %v1215 = vmul.f32 %v1213, 0.5
    %v1216 = vmul.f32 %v1214, %v1214
    %v1217 = vmul.f32 %v1215, %v1215
    %v1218 = vadd.f32 %v1216, %v1217
    %1219 = vadd.xlane.f32.xlu0 %v1218
    %v1220 = vpop.xlane.xlu0 %1219
    %v1221 = vrot.slane %v1220, 4
    %v1222 = vadd.f32 %v1220, %v1221
    %v1223 = vrot.slane %v1222, 2
    %v1224 = vadd.f32 %v1222, %v1223
    %v1225 = vrot.slane %v1224, 1
    %v1226 = vadd.f32 %v1224, %v1225
    %s1227 = vtos %v1226
    %v1228 = vstv %s1227
    %v1229 = vmul.f32 %v1228, %v99
    %v1230 = vsub.f32 %v1229, %v1068
    %v1231 = vmax.f32 %v1230, 0.0
    %v1232 = vadd.f32 %v1231, 1e-05
    %v1233 = vrsqrt.pop %v1232
    %v1234 = vadd.f32 %v1038, 1.0
    %v1235 = vmul.f32 %v1233, %v1234
    %v1236 = vmul.f32 %v1066, %v1235
    %v1237 = vsub.f32 %v1039, %v1236
    %1239 = vset.pattern.permute.xlu0 0
    %1240 = vperm.xlu0 %1239, %v1235
    %v1241 = vpop.permute.xlu0 %1240
    %v1243 = vmul.f32 %v1214, %v1241
    %v1244 = vmul.f32 %v1215, %v1241
    %1246 = vset.pattern.permute.xlu0 0
    %1247 = vperm.xlu0 %1246, %v1237
    %v1248 = vpop.permute.xlu0 %1247
    %v1250 = vadd.f32 %v1243, %v1248
    %v1251 = vadd.f32 %v1244, %v1248
    %1252 = vrot.lane.b32.xlu0 %v1250, 8
    %v1253 = vpop.permute.xlu0 %1252
    %1254 = vrot.lane.b32.xlu0 %v1251, 8
    %v1255 = vpop.permute.xlu0 %1254
    %v1256 = vsel %vm306, %v1253, %v1255
    %v1257 = vsel %vm306, %v1255, %v1253
    %v1258 = vmul.f32 %v312, %v1257
    %v1259 = vmul.f32 %v316, %v1256
    %1260 = vrot.lane.b32.xlu0 %v1250, 6
    %v1261 = vpop.permute.xlu0 %1260
    %1262 = vrot.lane.b32.xlu0 %v1251, 6
    %v1263 = vpop.permute.xlu0 %1262
    %v1264 = vsel %vm323, %v1261, %v1263
    %v1265 = vsel %vm323, %v1263, %v1261
    %v1266 = vmul.f32 %v329, %v1265
    %v1267 = vmul.f32 %v333, %v1264
    %v1268 = vadd.f32 %v1258, %v1266
    %v1269 = vadd.f32 %v1259, %v1267
    %1270 = vrot.lane.b32.xlu0 %v1250, 4
    %v1271 = vpop.permute.xlu0 %1270
    %1272 = vrot.lane.b32.xlu0 %v1251, 4
    %v1273 = vpop.permute.xlu0 %1272
    %v1274 = vsel %vm342, %v1271, %v1273
    %v1275 = vsel %vm342, %v1273, %v1271
    %v1276 = vmul.f32 %v348, %v1275
    %v1277 = vmul.f32 %v352, %v1274
    %v1278 = vadd.f32 %v1268, %v1276
    %v1279 = vadd.f32 %v1269, %v1277
    %1280 = vrot.lane.b32.xlu0 %v1250, 2
    %v1281 = vpop.permute.xlu0 %1280
    %1282 = vrot.lane.b32.xlu0 %v1251, 2
    %v1283 = vpop.permute.xlu0 %1282
    %v1284 = vsel %vm361, %v1281, %v1283
    %v1285 = vsel %vm361, %v1283, %v1281
    %v1286 = vmul.f32 %v367, %v1285
    %v1287 = vmul.f32 %v371, %v1284
    %v1288 = vadd.f32 %v1278, %v1286
    %v1289 = vadd.f32 %v1279, %v1287
    %v1290 = vmul.f32 %v379, %v1250
    %v1291 = vmul.f32 %v383, %v1251
    %v1292 = vadd.f32 %v1288, %v1290
    %v1293 = vadd.f32 %v1289, %v1291
    %1294 = vrot.lane.b32.xlu0 %v1250, 126
    %v1295 = vpop.permute.xlu0 %1294
    %1296 = vrot.lane.b32.xlu0 %v1251, 126
    %v1297 = vpop.permute.xlu0 %1296
    %v1298 = vsel %vm392, %v1295, %v1297
    %v1299 = vsel %vm392, %v1297, %v1295
    %v1300 = vmul.f32 %v398, %v1298
    %v1301 = vmul.f32 %v402, %v1299
    %v1302 = vadd.f32 %v1292, %v1300
    %v1303 = vadd.f32 %v1293, %v1301
    %1304 = vrot.lane.b32.xlu0 %v1250, 124
    %v1305 = vpop.permute.xlu0 %1304
    %1306 = vrot.lane.b32.xlu0 %v1251, 124
    %v1307 = vpop.permute.xlu0 %1306
    %v1308 = vsel %vm411, %v1305, %v1307
    %v1309 = vsel %vm411, %v1307, %v1305
    %v1310 = vmul.f32 %v417, %v1308
    %v1311 = vmul.f32 %v421, %v1309
    %v1312 = vadd.f32 %v1302, %v1310
    %v1313 = vadd.f32 %v1303, %v1311
    %1314 = vrot.lane.b32.xlu0 %v1250, 122
    %v1315 = vpop.permute.xlu0 %1314
    %1316 = vrot.lane.b32.xlu0 %v1251, 122
    %v1317 = vpop.permute.xlu0 %1316
    %v1318 = vsel %vm430, %v1315, %v1317
    %v1319 = vsel %vm430, %v1317, %v1315
    %v1320 = vmul.f32 %v436, %v1318
    %v1321 = vmul.f32 %v440, %v1319
    %v1322 = vadd.f32 %v1312, %v1320
    %v1323 = vadd.f32 %v1313, %v1321
    %1324 = vrot.lane.b32.xlu0 %v1250, 120
    %v1325 = vpop.permute.xlu0 %1324
    %1326 = vrot.lane.b32.xlu0 %v1251, 120
    %v1327 = vpop.permute.xlu0 %1326
    %v1328 = vsel %vm449, %v1325, %v1327
    %v1329 = vsel %vm449, %v1327, %v1325
    %v1330 = vmul.f32 %v455, %v1328
    %v1331 = vmul.f32 %v459, %v1329
    %v1332 = vadd.f32 %v1322, %v1330
    %v1333 = vadd.f32 %v1323, %v1331
    %v1334 = vadd.f32 %v1332, %v1333
    %1335 = vadd.xlane.f32.xlu0 %v1334
    %v1336 = vpop.xlane.xlu0 %1335
    %v1337 = vrot.slane %v1336, 4
    %v1338 = vadd.f32 %v1336, %v1337
    %v1339 = vrot.slane %v1338, 2
    %v1340 = vadd.f32 %v1338, %v1339
    %v1341 = vrot.slane %v1340, 1
    %v1342 = vadd.f32 %v1340, %v1341
    %s1343 = vtos %v1342
    %v1344 = vstv %s1343
    %v1345 = vmul.f32 %v1332, %v1332
    %v1346 = vmul.f32 %v1333, %v1333
    %v1347 = vadd.f32 %v1345, %v1346
    %1348 = vadd.xlane.f32.xlu0 %v1347
    %v1349 = vpop.xlane.xlu0 %1348
    %v1350 = vrot.slane %v1349, 4
    %v1351 = vadd.f32 %v1349, %v1350
    %v1352 = vrot.slane %v1351, 2
    %v1353 = vadd.f32 %v1351, %v1352
    %v1354 = vrot.slane %v1353, 1
    %v1355 = vadd.f32 %v1353, %v1354
    %s1356 = vtos %v1355
    %v1357 = vstv %s1356
    %v1358 = vadd.f32 %v1192, %v1194
    %1359 = vadd.xlane.f32.xlu0 %v1358
    %v1360 = vpop.xlane.xlu0 %1359
    %v1361 = vrot.slane %v1360, 4
    %v1362 = vadd.f32 %v1360, %v1361
    %v1363 = vrot.slane %v1362, 2
    %v1364 = vadd.f32 %v1362, %v1363
    %v1365 = vrot.slane %v1364, 1
    %v1366 = vadd.f32 %v1364, %v1365
    %s1367 = vtos %v1366
    %v1368 = vstv %s1367
    %v1369 = vmul.f32 %v1192, %v1192
    %v1370 = vmul.f32 %v1194, %v1194
    %v1371 = vadd.f32 %v1369, %v1370
    %1372 = vadd.xlane.f32.xlu0 %v1371
    %v1373 = vpop.xlane.xlu0 %1372
    %v1374 = vrot.slane %v1373, 4
    %v1375 = vadd.f32 %v1373, %v1374
    %v1376 = vrot.slane %v1375, 2
    %v1377 = vadd.f32 %v1375, %v1376
    %v1378 = vrot.slane %v1377, 1
    %v1379 = vadd.f32 %v1377, %v1378
    %s1380 = vtos %v1379
    %v1381 = vstv %s1380
    %v1382 = vadd.f32 %v1344, %v1368
    %v1383 = vmul.f32 %v1382, %v513
    %v1384 = vadd.f32 %v1357, %v1381
    %v1385 = vmul.f32 %v1384, %v513
    %v1386 = vmul.f32 %v1383, %v1383
    %v1387 = vsub.f32 %v1385, %v1386
    %v1388 = vmax.f32 %v1387, 0.0
    %v1389 = vadd.f32 %v1388, 1e-05
    %v1390 = vrsqrt.pop %v1389
    %v1391 = vadd.f32 %v1041, 1.0
    %v1392 = vmul.f32 %v1390, %v1391
    %v1393 = vmul.f32 %v1383, %v1392
    %v1395 = vrot.slane %v1393, 6
    %v1397 = vsub.f32 %v1041, %v1395
    %v1398 = vlaneseq
    %v1399 = vshrl.u32 %v1398, 7
    %v1400 = vsub.s32 2, %v1399
    %v1401 = vrot.slane %v1397, %v1400
    %v1402 = vmul.f32 %v28, %v1401
    %v1403 = vsel %vm534, %v1402, 0.0
    %1404 = vadd.xlane.f32.xlu0 %v1403
    %v1405 = vpop.xlane.xlu0 %1404
    %v1406 = vlaneseq
    %v1407 = vshrl.u32 %v1406, 7
    %v1408 = vsub.s32 3, %v1407
    %v1409 = vrot.slane %v1397, %v1408
    %v1410 = vmul.f32 %v29, %v1409
    %v1411 = vsel %vm534, %v1410, 0.0
    %1412 = vadd.xlane.f32.xlu0 %v1411
    %v1413 = vpop.xlane.xlu0 %1412
    %v1414 = vadd.f32 %v1405, %v1413
    %v1415 = vadd.f32 %v1414, %v34
    %v1416 = vlaneseq
    %v1417 = vshrl.u32 %v1416, 7
    %v1418 = vsub.s32 0, %v1417
    %v1419 = vrot.slane %v1392, %v1418
    %v1420 = vmul.f32 %v28, %v1419
    %v1421 = vlaneseq
    %v1422 = vshrl.u32 %v1421, 7
    %v1423 = vsub.s32 1, %v1422
    %v1424 = vrot.slane %v1392, %v1423
    %v1425 = vmul.f32 %v29, %v1424
    %v1427 = vsel %vm534, %v1425, 0
    %1429 = vmatprep.subr.mxu0 0.0
    %1430 = vmatpush1.msra.mxu0 0.0
    %1431 = vmatprep.subr.mxu0 0.0
    %1432 = vmatpush1.msra.mxu0 0.0
    %1433 = vmatprep.subr.mxu0 0.0
    %1434 = vmatpush1.msra.mxu0 0.0
    %1435 = vmatprep.subr.mxu0 0.0
    %1436 = vmatpush1.msra.mxu0 0.0
    %1437 = vmatprep.subr.mxu0 0.0
    %1438 = vmatpush1.msra.mxu0 0.0
    %1439 = vmatprep.subr.mxu0 0.0
    %1440 = vmatpush1.msra.mxu0 0.0
    %1441 = vmatprep.subr.mxu0 0.0
    %1442 = vmatpush1.msra.mxu0 0.0
    %1443 = vmatprep.subr.mxu0 0.0
    %1444 = vmatpush1.msra.mxu0 0.0
    %1445 = vmatprep.subr.mxu0 0.0
    %1446 = vmatpush1.msra.mxu0 0.0
    %1447 = vmatprep.subr.mxu0 0.0
    %1448 = vmatpush1.msra.mxu0 0.0
    %1449 = vmatprep.subr.mxu0 0.0
    %1450 = vmatpush1.msra.mxu0 0.0
    %1451 = vmatprep.subr.mxu0 0.0
    %1452 = vmatpush1.msra.mxu0 0.0
    %1453 = vmatprep.subr.mxu0 0.0
    %1454 = vmatpush1.msra.mxu0 0.0
    %1455 = vmatprep.subr.mxu0 0.0
    %1456 = vmatpush1.msra.mxu0 0.0
    %1457 = vmatprep.subr.mxu0 0.0
    %1458 = vmatpush1.msra.mxu0 0.0
    %1459 = vmatprep.subr.mxu0 %v1194
    %1460 = vmatpush1.msra.mxu0 %v1192
    %1461 = vmatprep.subr.mxu0 0.0
    %1462 = vmatpush2.msra.mxu0 0.0
    %1463 = vmatprep.subr.mxu0 0.0
    %1464 = vmatpush2.msra.mxu0 0.0
    %1465 = vmatprep.subr.mxu0 0.0
    %1466 = vmatpush2.msra.mxu0 0.0
    %1467 = vmatprep.subr.mxu0 0.0
    %1468 = vmatpush2.msra.mxu0 0.0
    %1469 = vmatprep.subr.mxu0 0.0
    %1470 = vmatpush2.msra.mxu0 0.0
    %1471 = vmatprep.subr.mxu0 0.0
    %1472 = vmatpush2.msra.mxu0 0.0
    %1473 = vmatprep.subr.mxu0 0.0
    %1474 = vmatpush2.msra.mxu0 0.0
    %1475 = vmatprep.subr.mxu0 0.0
    %1476 = vmatpush2.msra.mxu0 0.0
    %1477 = vmatprep.subr.mxu0 0.0
    %1478 = vmatpush2.msra.mxu0 0.0
    %1479 = vmatprep.subr.mxu0 0.0
    %1480 = vmatpush2.msra.mxu0 0.0
    %1481 = vmatprep.subr.mxu0 0.0
    %1482 = vmatpush2.msra.mxu0 0.0
    %1483 = vmatprep.subr.mxu0 0.0
    %1484 = vmatpush2.msra.mxu0 0.0
    %1485 = vmatprep.subr.mxu0 0.0
    %1486 = vmatpush2.msra.mxu0 0.0
    %1487 = vmatprep.subr.mxu0 0.0
    %1488 = vmatpush2.msra.mxu0 0.0
    %1489 = vmatprep.subr.mxu0 0.0
    %1490 = vmatpush2.msra.mxu0 0.0
    %1491 = vmatprep.subr.mxu0 0.0
    %1492 = vmatpush2.msra.mxu0 0.0
    %1493 = vmatprep.mubr.f32.mxu0 0.0
    %1494 = vmatmul.mubr.f32.gmra.mxu0 %v1427
    %v1495 = vpop.f32.mrf.mxu0
    %v1496 = vadd.f32 0.0, %v1495
    %v1497 = vpop.f32.mrf.mxu0
    %v1498 = vadd.f32 0.0, %v1497
    %1499 = vdwg.mxu0
    %v1501 = vsel %vm534, %v1420, 0
    %1503 = vmatprep.subr.mxu0 0.0
    %1504 = vmatpush1.msra.mxu0 0.0
    %1505 = vmatprep.subr.mxu0 0.0
    %1506 = vmatpush1.msra.mxu0 0.0
    %1507 = vmatprep.subr.mxu0 0.0
    %1508 = vmatpush1.msra.mxu0 0.0
    %1509 = vmatprep.subr.mxu0 0.0
    %1510 = vmatpush1.msra.mxu0 0.0
    %1511 = vmatprep.subr.mxu0 0.0
    %1512 = vmatpush1.msra.mxu0 0.0
    %1513 = vmatprep.subr.mxu0 0.0
    %1514 = vmatpush1.msra.mxu0 0.0
    %1515 = vmatprep.subr.mxu0 0.0
    %1516 = vmatpush1.msra.mxu0 0.0
    %1517 = vmatprep.subr.mxu0 0.0
    %1518 = vmatpush1.msra.mxu0 0.0
    %1519 = vmatprep.subr.mxu0 0.0
    %1520 = vmatpush1.msra.mxu0 0.0
    %1521 = vmatprep.subr.mxu0 0.0
    %1522 = vmatpush1.msra.mxu0 0.0
    %1523 = vmatprep.subr.mxu0 0.0
    %1524 = vmatpush1.msra.mxu0 0.0
    %1525 = vmatprep.subr.mxu0 0.0
    %1526 = vmatpush1.msra.mxu0 0.0
    %1527 = vmatprep.subr.mxu0 0.0
    %1528 = vmatpush1.msra.mxu0 0.0
    %1529 = vmatprep.subr.mxu0 0.0
    %1530 = vmatpush1.msra.mxu0 0.0
    %1531 = vmatprep.subr.mxu0 0.0
    %1532 = vmatpush1.msra.mxu0 0.0
    %1533 = vmatprep.subr.mxu0 %v1333
    %1534 = vmatpush1.msra.mxu0 %v1332
    %1535 = vmatprep.subr.mxu0 0.0
    %1536 = vmatpush2.msra.mxu0 0.0
    %1537 = vmatprep.subr.mxu0 0.0
    %1538 = vmatpush2.msra.mxu0 0.0
    %1539 = vmatprep.subr.mxu0 0.0
    %1540 = vmatpush2.msra.mxu0 0.0
    %1541 = vmatprep.subr.mxu0 0.0
    %1542 = vmatpush2.msra.mxu0 0.0
    %1543 = vmatprep.subr.mxu0 0.0
    %1544 = vmatpush2.msra.mxu0 0.0
    %1545 = vmatprep.subr.mxu0 0.0
    %1546 = vmatpush2.msra.mxu0 0.0
    %1547 = vmatprep.subr.mxu0 0.0
    %1548 = vmatpush2.msra.mxu0 0.0
    %1549 = vmatprep.subr.mxu0 0.0
    %1550 = vmatpush2.msra.mxu0 0.0
    %1551 = vmatprep.subr.mxu0 0.0
    %1552 = vmatpush2.msra.mxu0 0.0
    %1553 = vmatprep.subr.mxu0 0.0
    %1554 = vmatpush2.msra.mxu0 0.0
    %1555 = vmatprep.subr.mxu0 0.0
    %1556 = vmatpush2.msra.mxu0 0.0
    %1557 = vmatprep.subr.mxu0 0.0
    %1558 = vmatpush2.msra.mxu0 0.0
    %1559 = vmatprep.subr.mxu0 0.0
    %1560 = vmatpush2.msra.mxu0 0.0
    %1561 = vmatprep.subr.mxu0 0.0
    %1562 = vmatpush2.msra.mxu0 0.0
    %1563 = vmatprep.subr.mxu0 0.0
    %1564 = vmatpush2.msra.mxu0 0.0
    %1565 = vmatprep.subr.mxu0 0.0
    %1566 = vmatpush2.msra.mxu0 0.0
    %1567 = vmatprep.mubr.f32.mxu0 0.0
    %1568 = vmatmul.mubr.f32.gmra.mxu0 %v1501
    %v1569 = vpop.f32.mrf.mxu0
    %v1570 = vadd.f32 %v1496, %v1569
    %v1571 = vpop.f32.mrf.mxu0
    %v1572 = vadd.f32 %v1498, %v1571
    %1573 = vdwg.mxu0
    %1575 = vset.pattern.permute.xlu0 0
    %1576 = vperm.xlu0 %1575, %v1415
    %v1577 = vpop.permute.xlu0 %1576
    %v1579 = vadd.f32 %v1570, %v1577
    %v1580 = vadd.f32 %v1572, %v1577
    %v1581 = vxor.u32 %v1579, 2147483648
    %v1582 = vxor.u32 %v1580, 2147483648
    %v1583 = vmul.f32 %v1581, 1.442695
    %v1584 = vpow.pop %v1583
    %v1585 = vmul.f32 %v1582, 1.442695
    %v1586 = vpow.pop %v1585
    %v1587 = vadd.f32 %v1584, 1.0
    %v1588 = vadd.f32 %v1586, 1.0
    %v1589 = vrcp.pop %v1587
    %v1590 = vmul.f32 1.0, %v1589
    %v1591 = vrcp.pop %v1588
    %v1592 = vmul.f32 1.0, %v1591
    %v1593 = vmul.f32 %v1579, %v1590
    %v1594 = vmul.f32 %v1580, %v1592
    %1595 = vmatprep.subr.mxu0 0.0
    %1596 = vmatpush1.msra.mxu0 0.0
    %1597 = vmatprep.subr.mxu0 0.0
    %1598 = vmatpush1.msra.mxu0 0.0
    %1599 = vmatprep.subr.mxu0 0.0
    %1600 = vmatpush1.msra.mxu0 0.0
    %1601 = vmatprep.subr.mxu0 0.0
    %1602 = vmatpush1.msra.mxu0 0.0
    %1603 = vmatprep.subr.mxu0 0.0
    %1604 = vmatpush1.msra.mxu0 0.0
    %1605 = vmatprep.subr.mxu0 0.0
    %1606 = vmatpush1.msra.mxu0 0.0
    %1607 = vmatprep.subr.mxu0 0.0
    %1608 = vmatpush1.msra.mxu0 0.0
    %1609 = vmatprep.subr.mxu0 0.0
    %1610 = vmatpush1.msra.mxu0 0.0
    %1611 = vmatprep.subr.mxu0 0.0
    %1612 = vmatpush1.msra.mxu0 0.0
    %1613 = vmatprep.subr.mxu0 0.0
    %1614 = vmatpush1.msra.mxu0 0.0
    %1615 = vmatprep.subr.mxu0 0.0
    %1616 = vmatpush1.msra.mxu0 0.0
    %1617 = vmatprep.subr.mxu0 0.0
    %1618 = vmatpush1.msra.mxu0 0.0
    %1619 = vmatprep.subr.mxu0 0.0
    %1620 = vmatpush1.msra.mxu0 0.0
    %1621 = vmatprep.subr.mxu0 0.0
    %1622 = vmatpush1.msra.mxu0 0.0
    %1623 = vmatprep.subr.mxu0 0.0
    %1624 = vmatpush1.msra.mxu0 0.0
    %1625 = vmatprep.subr.mxu0 %v1594
    %1626 = vmatpush1.msra.mxu0 %v1593
    %1627 = vmatprep.subr.mxu0 0.0
    %1628 = vmatpush2.msra.mxu0 0.0
    %1629 = vmatprep.subr.mxu0 0.0
    %1630 = vmatpush2.msra.mxu0 0.0
    %1631 = vmatprep.subr.mxu0 0.0
    %1632 = vmatpush2.msra.mxu0 0.0
    %1633 = vmatprep.subr.mxu0 0.0
    %1634 = vmatpush2.msra.mxu0 0.0
    %1635 = vmatprep.subr.mxu0 0.0
    %1636 = vmatpush2.msra.mxu0 0.0
    %1637 = vmatprep.subr.mxu0 0.0
    %1638 = vmatpush2.msra.mxu0 0.0
    %1639 = vmatprep.subr.mxu0 0.0
    %1640 = vmatpush2.msra.mxu0 0.0
    %1641 = vmatprep.subr.mxu0 0.0
    %1642 = vmatpush2.msra.mxu0 0.0
    %1643 = vmatprep.subr.mxu0 0.0
    %1644 = vmatpush2.msra.mxu0 0.0
    %1645 = vmatprep.subr.mxu0 0.0
    %1646 = vmatpush2.msra.mxu0 0.0
    %1647 = vmatprep.subr.mxu0 0.0
    %1648 = vmatpush2.msra.mxu0 0.0
    %1649 = vmatprep.subr.mxu0 0.0
    %1650 = vmatpush2.msra.mxu0 0.0
    %1651 = vmatprep.subr.mxu0 0.0
    %1652 = vmatpush2.msra.mxu0 0.0
    %1653 = vmatprep.subr.mxu0 0.0
    %1654 = vmatpush2.msra.mxu0 0.0
    %1655 = vmatprep.subr.mxu0 0.0
    %1656 = vmatpush2.msra.mxu0 0.0
    %1657 = vmatprep.subr.mxu0 0.0
    %1658 = vmatpush2.msra.mxu0 0.0
    %1659 = vmatprep.mubr.f32.mxu0 0.0
    %1660 = vmatmul.mubr.f32.gmra.mxu0 %v733
    %v1661 = vpop.f32.mrf.mxu0
    %v1662 = vadd.f32 %v730, %v1661
    %v1663 = vpop.f32.mrf.mxu0
    %v1664 = vadd.f32 %v730, %v1663
    %1665 = vdwg.mxu0
    %v1666 = vmul.f32 %v1192, %v1662
    %v1667 = vmul.f32 %v1194, %v1664
    %v1668 = vadd.f32 %v1666, %v1667
    %1669 = vadd.xlane.f32.xlu0 %v1668
    %v1670 = vpop.xlane.xlu0 %1669
    %v1671 = vrot.slane %v1670, 4
    %v1672 = vadd.f32 %v1670, %v1671
    %v1673 = vrot.slane %v1672, 2
    %v1674 = vadd.f32 %v1672, %v1673
    %v1675 = vrot.slane %v1674, 1
    %v1676 = vadd.f32 %v1674, %v1675
    %s1677 = vtos %v1676
    %v1678 = vstv %s1677
    %v1679 = vmul.f32 %v1666, %v1666
    %v1680 = vmul.f32 %v1667, %v1667
    %v1681 = vadd.f32 %v1679, %v1680
    %1682 = vadd.xlane.f32.xlu0 %v1681
    %v1683 = vpop.xlane.xlu0 %1682
    %v1684 = vrot.slane %v1683, 4
    %v1685 = vadd.f32 %v1683, %v1684
    %v1686 = vrot.slane %v1685, 2
    %v1687 = vadd.f32 %v1685, %v1686
    %v1688 = vrot.slane %v1687, 1
    %v1689 = vadd.f32 %v1687, %v1688
    %s1690 = vtos %v1689
    %v1691 = vstv %s1690
    %v1692 = vadd.f32 %v1344, %v1678
    %v1693 = vmul.f32 %v1692, %v513
    %v1694 = vadd.f32 %v1357, %v1691
    %v1695 = vmul.f32 %v1694, %v513
    %v1696 = vmul.f32 %v1693, %v1693
    %v1697 = vsub.f32 %v1695, %v1696
    %v1698 = vmax.f32 %v1697, 0.0
    %v1699 = vadd.f32 %v1698, 1e-05
    %v1700 = vrsqrt.pop %v1699
    %v1701 = vmul.f32 %v1700, %v1391
    %v1702 = vmul.f32 %v1693, %v1701
    %v1704 = vrot.slane %v1702, 6
    %v1706 = vsub.f32 %v1041, %v1704
    %v1707 = vlaneseq
    %v1708 = vshrl.u32 %v1707, 7
    %v1709 = vsub.s32 6, %v1708
    %v1710 = vrot.slane %v1706, %v1709
    %v1711 = vmul.f32 %v31, %v1710
    %v1712 = vsel %vm534, %v1711, 0.0
    %1713 = vadd.xlane.f32.xlu0 %v1712
    %v1714 = vpop.xlane.xlu0 %1713
    %v1715 = vlaneseq
    %v1716 = vshrl.u32 %v1715, 7
    %v1717 = vsub.s32 7, %v1716
    %v1718 = vrot.slane %v1706, %v1717
    %v1719 = vmul.f32 %v32, %v1718
    %v1720 = vsel %vm534, %v1719, 0.0
    %1721 = vadd.xlane.f32.xlu0 %v1720
    %v1722 = vpop.xlane.xlu0 %1721
    %v1723 = vadd.f32 %v1714, %v1722
    %v1724 = vadd.f32 %v1723, %v36
    %v1725 = vlaneseq
    %v1726 = vshrl.u32 %v1725, 7
    %v1727 = vsub.s32 4, %v1726
    %v1728 = vrot.slane %v1701, %v1727
    %v1729 = vmul.f32 %v31, %v1728
    %v1730 = vlaneseq
    %v1731 = vshrl.u32 %v1730, 7
    %v1732 = vsub.s32 5, %v1731
    %v1733 = vrot.slane %v1701, %v1732
    %v1734 = vmul.f32 %v32, %v1733
    %v1736 = vsel %vm534, %v1734, 0
    %1738 = vmatprep.subr.mxu0 0.0
    %1739 = vmatpush1.msra.mxu0 0.0
    %1740 = vmatprep.subr.mxu0 0.0
    %1741 = vmatpush1.msra.mxu0 0.0
    %1742 = vmatprep.subr.mxu0 0.0
    %1743 = vmatpush1.msra.mxu0 0.0
    %1744 = vmatprep.subr.mxu0 0.0
    %1745 = vmatpush1.msra.mxu0 0.0
    %1746 = vmatprep.subr.mxu0 0.0
    %1747 = vmatpush1.msra.mxu0 0.0
    %1748 = vmatprep.subr.mxu0 0.0
    %1749 = vmatpush1.msra.mxu0 0.0
    %1750 = vmatprep.subr.mxu0 0.0
    %1751 = vmatpush1.msra.mxu0 0.0
    %1752 = vmatprep.subr.mxu0 0.0
    %1753 = vmatpush1.msra.mxu0 0.0
    %1754 = vmatprep.subr.mxu0 0.0
    %1755 = vmatpush1.msra.mxu0 0.0
    %1756 = vmatprep.subr.mxu0 0.0
    %1757 = vmatpush1.msra.mxu0 0.0
    %1758 = vmatprep.subr.mxu0 0.0
    %1759 = vmatpush1.msra.mxu0 0.0
    %1760 = vmatprep.subr.mxu0 0.0
    %1761 = vmatpush1.msra.mxu0 0.0
    %1762 = vmatprep.subr.mxu0 0.0
    %1763 = vmatpush1.msra.mxu0 0.0
    %1764 = vmatprep.subr.mxu0 0.0
    %1765 = vmatpush1.msra.mxu0 0.0
    %1766 = vmatprep.subr.mxu0 0.0
    %1767 = vmatpush1.msra.mxu0 0.0
    %1768 = vmatprep.subr.mxu0 %v1667
    %1769 = vmatpush1.msra.mxu0 %v1666
    %1770 = vmatprep.subr.mxu0 0.0
    %1771 = vmatpush2.msra.mxu0 0.0
    %1772 = vmatprep.subr.mxu0 0.0
    %1773 = vmatpush2.msra.mxu0 0.0
    %1774 = vmatprep.subr.mxu0 0.0
    %1775 = vmatpush2.msra.mxu0 0.0
    %1776 = vmatprep.subr.mxu0 0.0
    %1777 = vmatpush2.msra.mxu0 0.0
    %1778 = vmatprep.subr.mxu0 0.0
    %1779 = vmatpush2.msra.mxu0 0.0
    %1780 = vmatprep.subr.mxu0 0.0
    %1781 = vmatpush2.msra.mxu0 0.0
    %1782 = vmatprep.subr.mxu0 0.0
    %1783 = vmatpush2.msra.mxu0 0.0
    %1784 = vmatprep.subr.mxu0 0.0
    %1785 = vmatpush2.msra.mxu0 0.0
    %1786 = vmatprep.subr.mxu0 0.0
    %1787 = vmatpush2.msra.mxu0 0.0
    %1788 = vmatprep.subr.mxu0 0.0
    %1789 = vmatpush2.msra.mxu0 0.0
    %1790 = vmatprep.subr.mxu0 0.0
    %1791 = vmatpush2.msra.mxu0 0.0
    %1792 = vmatprep.subr.mxu0 0.0
    %1793 = vmatpush2.msra.mxu0 0.0
    %1794 = vmatprep.subr.mxu0 0.0
    %1795 = vmatpush2.msra.mxu0 0.0
    %1796 = vmatprep.subr.mxu0 0.0
    %1797 = vmatpush2.msra.mxu0 0.0
    %1798 = vmatprep.subr.mxu0 0.0
    %1799 = vmatpush2.msra.mxu0 0.0
    %1800 = vmatprep.subr.mxu0 0.0
    %1801 = vmatpush2.msra.mxu0 0.0
    %1802 = vmatprep.mubr.f32.mxu0 0.0
    %1803 = vmatmul.mubr.f32.gmra.mxu0 %v1736
    %v1804 = vpop.f32.mrf.mxu0
    %v1805 = vadd.f32 0.0, %v1804
    %v1806 = vpop.f32.mrf.mxu0
    %v1807 = vadd.f32 0.0, %v1806
    %1808 = vdwg.mxu0
    %v1810 = vsel %vm534, %v1729, 0
    %1812 = vmatprep.subr.mxu0 0.0
    %1813 = vmatpush1.msra.mxu0 0.0
    %1814 = vmatprep.subr.mxu0 0.0
    %1815 = vmatpush1.msra.mxu0 0.0
    %1816 = vmatprep.subr.mxu0 0.0
    %1817 = vmatpush1.msra.mxu0 0.0
    %1818 = vmatprep.subr.mxu0 0.0
    %1819 = vmatpush1.msra.mxu0 0.0
    %1820 = vmatprep.subr.mxu0 0.0
    %1821 = vmatpush1.msra.mxu0 0.0
    %1822 = vmatprep.subr.mxu0 0.0
    %1823 = vmatpush1.msra.mxu0 0.0
    %1824 = vmatprep.subr.mxu0 0.0
    %1825 = vmatpush1.msra.mxu0 0.0
    %1826 = vmatprep.subr.mxu0 0.0
    %1827 = vmatpush1.msra.mxu0 0.0
    %1828 = vmatprep.subr.mxu0 0.0
    %1829 = vmatpush1.msra.mxu0 0.0
    %1830 = vmatprep.subr.mxu0 0.0
    %1831 = vmatpush1.msra.mxu0 0.0
    %1832 = vmatprep.subr.mxu0 0.0
    %1833 = vmatpush1.msra.mxu0 0.0
    %1834 = vmatprep.subr.mxu0 0.0
    %1835 = vmatpush1.msra.mxu0 0.0
    %1836 = vmatprep.subr.mxu0 0.0
    %1837 = vmatpush1.msra.mxu0 0.0
    %1838 = vmatprep.subr.mxu0 0.0
    %1839 = vmatpush1.msra.mxu0 0.0
    %1840 = vmatprep.subr.mxu0 0.0
    %1841 = vmatpush1.msra.mxu0 0.0
    %1842 = vmatprep.subr.mxu0 %v1333
    %1843 = vmatpush1.msra.mxu0 %v1332
    %1844 = vmatprep.subr.mxu0 0.0
    %1845 = vmatpush2.msra.mxu0 0.0
    %1846 = vmatprep.subr.mxu0 0.0
    %1847 = vmatpush2.msra.mxu0 0.0
    %1848 = vmatprep.subr.mxu0 0.0
    %1849 = vmatpush2.msra.mxu0 0.0
    %1850 = vmatprep.subr.mxu0 0.0
    %1851 = vmatpush2.msra.mxu0 0.0
    %1852 = vmatprep.subr.mxu0 0.0
    %1853 = vmatpush2.msra.mxu0 0.0
    %1854 = vmatprep.subr.mxu0 0.0
    %1855 = vmatpush2.msra.mxu0 0.0
    %1856 = vmatprep.subr.mxu0 0.0
    %1857 = vmatpush2.msra.mxu0 0.0
    %1858 = vmatprep.subr.mxu0 0.0
    %1859 = vmatpush2.msra.mxu0 0.0
    %1860 = vmatprep.subr.mxu0 0.0
    %1861 = vmatpush2.msra.mxu0 0.0
    %1862 = vmatprep.subr.mxu0 0.0
    %1863 = vmatpush2.msra.mxu0 0.0
    %1864 = vmatprep.subr.mxu0 0.0
    %1865 = vmatpush2.msra.mxu0 0.0
    %1866 = vmatprep.subr.mxu0 0.0
    %1867 = vmatpush2.msra.mxu0 0.0
    %1868 = vmatprep.subr.mxu0 0.0
    %1869 = vmatpush2.msra.mxu0 0.0
    %1870 = vmatprep.subr.mxu0 0.0
    %1871 = vmatpush2.msra.mxu0 0.0
    %1872 = vmatprep.subr.mxu0 0.0
    %1873 = vmatpush2.msra.mxu0 0.0
    %1874 = vmatprep.subr.mxu0 0.0
    %1875 = vmatpush2.msra.mxu0 0.0
    %1876 = vmatprep.mubr.f32.mxu0 0.0
    %1877 = vmatmul.mubr.f32.gmra.mxu0 %v1810
    %v1878 = vpop.f32.mrf.mxu0
    %v1879 = vadd.f32 %v1805, %v1878
    %v1880 = vpop.f32.mrf.mxu0
    %v1881 = vadd.f32 %v1807, %v1880
    %1882 = vdwg.mxu0
    %1884 = vset.pattern.permute.xlu0 0
    %1885 = vperm.xlu0 %1884, %v1724
    %v1886 = vpop.permute.xlu0 %1885
    %v1888 = vadd.f32 %v1879, %v1886
    %v1889 = vadd.f32 %v1881, %v1886
    %s1890 = scalar_lea.vmem [#allocation2], 16
    %1891 = vst [vmem:[%s1890] sm:$0xff] %v1888
    %1892 = vst [vmem:[%s1890 + $0x8] sm:$0xff] %v1889
    // Predicated region
    $region30: #{tpu_custom_call.1} parent=1 // pred_check
      _
    $region31: #{tpu_custom_call.1} parent=1 // pred_check_branch
      %1894 = sbr.rel (0) target = $region33
    $region32: #{tpu_custom_call.1} parent=1 // pred_region
      %s1896 = ssub.s32 512, 512
      %1897 = vsyncadd [#allocation3], %s1896
      %s1898 = sshll.u32 [#allocation2], 4
      %s1899 = int_to_ptr.vmem [resolvable:$true] %s1898
      %1904 = dma.vmem_to_hbm [thread:$0]  %s1899, 512, %s7, [#allocation3], 256, 256, 16
    $region33: #{tpu_custom_call.1} parent=1 // pred_fallthru
      _
    // Predicated region
    $region34: #{tpu_custom_call.1} parent=1 // pred_check
      _
    $region35: #{tpu_custom_call.1} parent=1 // pred_check_branch
      %1906 = sbr.rel (0) target = $region37
    $region36: #{tpu_custom_call.1} parent=1 // pred_region
      %1907 = dma.done [#allocation3], 512
    $region37: #{tpu_custom_call.1} parent=1 // pred_fallthru
      _
    %1908 = vsyncpa [#allocation3], 1

</llo_original>
